<compile_context>
chip_gen: v7x
topology: tpu7x:2x2x1
jax: 0.10.0
libtpu: 0.0.40
codegen_flags: <defaults>
</compile_context>

<pallas_src>
import math
from functools import partial

import numpy as np
import jax
import jax.numpy as jnp
from jax import lax
from jax.experimental import pallas as pl
from jax.experimental.pallas import tpu as pltpu


_INV_SQRT2 = 1.0 / math.sqrt(2.0)


def _round_up(x, m):
    return (x + m - 1) // m * m


def _erf_poly(x):
    """Abramowitz & Stegun 7.1.26 erf approximation, |err| < 1.5e-7.

    Only mul/add/div plus one exp, so the transcendental work lands on the EUP slot
    instead of a long VPU polynomial (and avoids relying on a Mosaic erf lowering).
    """
    p = 0.3275911
    a1, a2, a3, a4, a5 = 0.254829592, -0.284496736, 1.421413741, -1.453152027, 1.061405429
    sgn = jnp.where(x < 0.0, -1.0, 1.0)
    ax = jnp.abs(x)
    t = 1.0 / (1.0 + p * ax)
    poly = t * (a1 + t * (a2 + t * (a3 + t * (a4 + t * a5))))
    return sgn * (1.0 - poly * jnp.exp(-ax * ax))


def _gelu_exact(x):
    # Matches nn.GELU() default (erf form); tanh-approx would also fit the tolerance but
    # moves further from f32-exact parity, so we keep the erf form.
    return 0.5 * x * (1.0 + _erf_poly(x * _INV_SQRT2))


def _rgb_head_kernel(xt_ref, w1_ref, b1_ref, w2_ref, b2_ref, o_ref, *, Wp, Lw_pad):
    """One (batch, row-tile) step: 3x3 conv (9 tap dots) -> GELU -> 1x1 conv.

    Layout: channels on sublanes, flattened (halo-rows x padded-width) spatial on lanes.

    xt_ref : (1, 1, C, Lt)      bf16  reflect-padded tile, flat index = row*Wp + col
    w1_ref : (9, C, C)          bf16  3x3 weights, tap = dy*3 + dx, each (C_out, C_in)
    b1_ref : (C, 1)             f32
    w2_ref : (C2, C)            bf16  1x1 weights
    b2_ref : (C2, 1)            f32
    o_ref  : (1, 1, C2, Lw_pad) bf16  lane-dense; seam/tail columns dropped by the wrapper
    """
    acc = None
    for tap in range(9):
        dy, dx = divmod(tap, 3)
        off = dy * Wp + dx
        x_tap = xt_ref[0, 0, :, off:off + Lw_pad]          # (C, Lw_pad) static ref slice
        part = jnp.dot(w1_ref[tap], x_tap, preferred_element_type=jnp.float32)
        acc = part if acc is None else acc + part          # f32 accumulation
    h = _gelu_exact(acc + b1_ref[...])                     # (C, Lw_pad) f32
    y = jnp.dot(w2_ref[...], h.astype(jnp.bfloat16), preferred_element_type=jnp.float32)
    o_ref[0, 0] = (y + b2_ref[...]).astype(o_ref.dtype)


def _choose_row_tile(H, Wp, C, C2, vmem_budget_bytes=12 << 20, max_rows=512):
    """Largest divisor of H whose per-step working set fits the budget (v7x 64 MiB safe)."""
    def step_bytes(ht):
        lw = _round_up(ht * Wp, 128)
        lt = _round_up(max((ht + 3) * Wp, lw + 2 * Wp + 2), 128)
        in_b = 2 * C * lt * 2        # double-buffered bf16 input tile
        out_b = 2 * C2 * lw * 2      # double-buffered bf16 output tile
        tmp_b = 3 * C * lw * 4       # f32 accumulator + GELU temporaries (rough)
        return in_b + out_b + tmp_b

    best = 1
    for d in range(1, H + 1):
        if H % d == 0 and d <= max_rows and step_bytes(d) <= vmem_budget_bytes:
            best = d
    return best


def rgb_head_forward(x_nchw, params, *, block_size=2, row_tile=None):
    """x_nchw: (N, width, H, W) float32.  Returns (N, 3, H*block_size, W*block_size) f32."""
    w1, b1, w2, b2 = params           # torch layouts: (C,C,3,3), (C,), (C2,C,1,1), (C2,)
    N, C, H, W = x_nchw.shape
    C2 = w2.shape[0]
    assert H >= 3 and W >= 2, "reflect padding needs H >= 3, W >= 2"

    Wp = W + 2                                     # padded row stride
    HT = row_tile if row_tile is not None else _choose_row_tile(H, Wp, C, C2)
    assert H % HT == 0, "row_tile must divide H"   # TODO(synk): ragged last row tile
    num_h = H // HT

    Lw = HT * Wp                                   # real flat output columns per tile
    Lw_pad = _round_up(Lw, 128)                    # lane-dense padded output width
    Lt_rows = (HT + 3) * Wp                        # gathered halo rows, flattened
    Lt = _round_up(max(Lt_rows, Lw_pad + 2 * Wp + 2), 128)

    # --- wrapper glue (one fused XLA pass): reflect pad + per-tile 2-row halo gather + bf16 cast.
    # TODO(synk): fold this into the kernel (element-indexed halo fetch + in-kernel edge-column
    # synthesis) to drop the remaining bf16 HBM round trip of the padded input.
    row_map = np.pad(np.arange(H), (1, 2), mode="reflect")          # padded row -> source row
    tile_rows = np.stack(
        [row_map[h * HT: h * HT + HT + 3] for h in range(num_h)], axis=0
    ).astype(np.int32)                                              # (num_h, HT+3)
    xg = jnp.pad(x_nchw, ((0, 0), (0, 0), (0, 0), (1, 1)), mode="reflect")   # (N,C,H,Wp)
    xg = xg[:, :, tile_rows, :]                                     # (N,C,num_h,HT+3,Wp)
    xg = jnp.transpose(xg, (0, 2, 1, 3, 4)).reshape(N, num_h, C, Lt_rows)
    xg = xg.astype(jnp.bfloat16)
    if Lt > Lt_rows:
        xg = jnp.pad(xg, ((0, 0), (0, 0), (0, 0), (0, Lt - Lt_rows)))

    # --- weights: tap-major (9, C_out, C_in) for the 3x3, (C2, C) for the 1x1 ---
    w1_k = jnp.transpose(w1, (2, 3, 0, 1)).reshape(9, C, C).astype(jnp.bfloat16)
    b1_k = b1.reshape(C, 1).astype(jnp.float32)
    w2_k = w2[:, :, 0, 0].astype(jnp.bfloat16)                      # (C2, C)
    b2_k = b2.reshape(C2, 1).astype(jnp.float32)

    kernel = partial(_rgb_head_kernel, Wp=Wp, Lw_pad=Lw_pad)

    y = pl.pallas_call(
        kernel,
        out_shape=jax.ShapeDtypeStruct((N, num_h, C2, Lw_pad), jnp.bfloat16),
        grid=(N, num_h),
        in_specs=[
            # TODO(synk): add pipeline_mode=pl.Buffered(3) here if v5e profiles show exposed DMA.
            pl.BlockSpec((1, 1, C, Lt), lambda b, h: (b, h, 0, 0)),
            pl.BlockSpec((9, C, C), lambda b, h: (0, 0, 0)),
            pl.BlockSpec((C, 1), lambda b, h: (0, 0)),
            pl.BlockSpec((C2, C), lambda b, h: (0, 0)),
            pl.BlockSpec((C2, 1), lambda b, h: (0, 0)),
        ],
        out_specs=pl.BlockSpec((1, 1, C2, Lw_pad), lambda b, h: (b, h, 0, 0)),
        compiler_params=pltpu.CompilerParams(
            dimension_semantics=("parallel", "parallel"),
            vmem_limit_bytes=32 * 1024 * 1024,
        ),
    )(xg, w1_k, b1_k, w2_k, b2_k)

    # --- wrapper glue: drop seam/tail columns, stitch row tiles, PixelShuffle (all bf16) ---
    y = y[..., :Lw].reshape(N, num_h, C2, HT, Wp)[..., :W]          # (N,num_h,C2,HT,W)
    y = jnp.transpose(y, (0, 2, 1, 3, 4)).reshape(N, C2, H, W)
    r = block_size
    Cout = C2 // (r * r)
    y = y.reshape(N, Cout, r, r, H, W)
    y = jnp.transpose(y, (0, 1, 4, 2, 5, 3)).reshape(N, Cout, H * r, W * r)
    return y.astype(jnp.float32)                                    # f32 only at the very end


def _reference_forward(x_nchw, params, *, block_size=2):
    """Pure-JAX f32 reference (no Pallas) for correctness checking."""
    w1, b1, w2, b2 = params
    N, C, H, W = x_nchw.shape
    xp = jnp.pad(x_nchw, ((0, 0), (0, 0), (1, 1), (1, 1)), mode="reflect")
    y = lax.conv_general_dilated(xp, w1, (1, 1), "VALID",
                                 dimension_numbers=("NCHW", "OIHW", "NCHW"))
    y = y + b1[None, :, None, None]
    y = 0.5 * y * (1.0 + lax.erf(y / math.sqrt(2.0)))
    y = lax.conv_general_dilated(y, w2, (1, 1), "VALID",
                                 dimension_numbers=("NCHW", "OIHW", "NCHW"))
    y = y + b2[None, :, None, None]
    r = block_size
    Cout = y.shape[1] // (r * r)
    y = y.reshape(N, Cout, r, r, H, W)
    y = jnp.transpose(y, (0, 1, 4, 2, 5, 3))
    return y.reshape(N, Cout, H * r, W * r)


def init_params(key, width=32, block_size=2):
    """Deterministic synthetic parameters matching RGB_Head.__init__ shapes."""
    k1, k2, k3, k4 = jax.random.split(key, 4)
    c2 = 3 * block_size ** 2
    w1 = jax.random.normal(k1, (width, width, 3, 3), jnp.float32) * 0.05
    b1 = jax.random.normal(k2, (width,), jnp.float32) * 0.05
    w2 = jax.random.normal(k3, (c2, width, 1, 1), jnp.float32) * 0.05
    b2 = jax.random.normal(k4, (c2,), jnp.float32) * 0.05
    return (w1, b1, w2, b2)


if __name__ == "__main__":
    width = 32
    block_size = 2
    N, H, W = 2, 16, 16

    key = jax.random.PRNGKey(0)
    kx, kp = jax.random.split(key)
    x = jax.random.normal(kx, (N, width, H, W), jnp.float32)
    params = init_params(kp, width=width, block_size=block_size)

    # row_tile=8 -> 2 row tiles per image: exercises the halo gather, the (batch, row) grid
    # and tile stitching on the small test shape.
    fwd = jax.jit(partial(rgb_head_forward, block_size=block_size, row_tile=8))
    out = jax.block_until_ready(fwd(x, params))

    ref = _reference_forward(x, params, block_size=block_size)
    assert out.shape == (N, 3, H * block_size, W * block_size), out.shape
    # bf16 MXU path (f32 accumulation) + bf16 kernel output: relaxed tolerance vs f32 reference.
    max_err = float(jnp.max(jnp.abs(out - ref)))
    assert jnp.allclose(out, ref, atol=3e-2, rtol=3e-2), max_err

    print("KERNEL_OK")
</pallas_src>

<mosaic_0001>
module attributes {stable_mosaic.version = 11 : i64} {
  func.func @_rgb_head_kernel(%arg0: i32, %arg1: i32, %arg2: memref<1x1x32x384xbf16, #tpu.memory_space<vmem>>, %arg3: memref<9x32x32xbf16, #tpu.memory_space<vmem>>, %arg4: memref<32x1xf32, #tpu.memory_space<vmem>>, %arg5: memref<12x32xbf16, #tpu.memory_space<vmem>>, %arg6: memref<12x1xf32, #tpu.memory_space<vmem>>, %arg7: memref<1x1x12x256xbf16, #tpu.memory_space<vmem>>) attributes {dimension_semantics = [#tpu.dimension_semantics<parallel>, #tpu.dimension_semantics<parallel>], iteration_bounds = array<i64: 2, 2>, scalar_prefetch = 0 : i64, scratch_operands = 0 : i64, tpu.core_type = #tpu.core_type<tc>, window_params = [{transform_indices = @transform_0, window_bounds = array<i64: 1, 1, 32, 384>}, {pipeline_mode = #tpu.pipeline_mode<synchronous>, transform_indices = @transform_1, window_bounds = array<i64: 9, 32, 32>}, {pipeline_mode = #tpu.pipeline_mode<synchronous>, transform_indices = @transform_2, window_bounds = array<i64: 32, 1>}, {pipeline_mode = #tpu.pipeline_mode<synchronous>, transform_indices = @transform_3, window_bounds = array<i64: 12, 32>}, {pipeline_mode = #tpu.pipeline_mode<synchronous>, transform_indices = @transform_4, window_bounds = array<i64: 12, 1>}, {transform_indices = @transform_5, window_bounds = array<i64: 1, 1, 12, 256>}]} {
    %c0 = arith.constant 0 : index
    %c0_0 = arith.constant 0 : index
    %c0_1 = arith.constant 0 : index
    %c0_2 = arith.constant 0 : index
    %0 = vector.load %arg2[%c0, %c0_0, %c0_1, %c0_2] : memref<1x1x32x384xbf16, #tpu.memory_space<vmem>>, vector<1x1x32x256xbf16>
    %1 = vector.shape_cast %0 : vector<1x1x32x256xbf16> to vector<32x256xbf16>
    %c0_3 = arith.constant 0 : index
    %c0_4 = arith.constant 0 : index
    %c0_5 = arith.constant 0 : index
    %2 = vector.load %arg3[%c0_3, %c0_4, %c0_5] : memref<9x32x32xbf16, #tpu.memory_space<vmem>>, vector<1x32x32xbf16>
    %3 = vector.shape_cast %2 : vector<1x32x32xbf16> to vector<32x32xbf16>
    %cst = arith.constant dense<0.000000e+00> : vector<32x256xf32>
    %4 = tpu.matmul %3, %1, %cst {dimension_numbers = #tpu.dot_dimension_numbers<[1], [0], [0], [1], [0, 0, 1, 1], [], []>} : vector<32x32xbf16>, vector<32x256xbf16>, vector<32x256xf32> -> vector<32x256xf32>
    %c0_6 = arith.constant 0 : index
    %c0_7 = arith.constant 0 : index
    %c0_8 = arith.constant 0 : index
    %c1 = arith.constant 1 : index
    %5 = vector.load %arg2[%c0_6, %c0_7, %c0_8, %c1] : memref<1x1x32x384xbf16, #tpu.memory_space<vmem>>, vector<1x1x32x256xbf16>
    %6 = vector.shape_cast %5 : vector<1x1x32x256xbf16> to vector<32x256xbf16>
    %c1_9 = arith.constant 1 : index
    %c0_10 = arith.constant 0 : index
    %c0_11 = arith.constant 0 : index
    %7 = vector.load %arg3[%c1_9, %c0_10, %c0_11] : memref<9x32x32xbf16, #tpu.memory_space<vmem>>, vector<1x32x32xbf16>
    %8 = vector.shape_cast %7 : vector<1x32x32xbf16> to vector<32x32xbf16>
    %cst_12 = arith.constant dense<0.000000e+00> : vector<32x256xf32>
    %9 = tpu.matmul %8, %6, %cst_12 {dimension_numbers = #tpu.dot_dimension_numbers<[1], [0], [0], [1], [0, 0, 1, 1], [], []>} : vector<32x32xbf16>, vector<32x256xbf16>, vector<32x256xf32> -> vector<32x256xf32>
    %10 = arith.addf %4, %9 : vector<32x256xf32>
    %c0_13 = arith.constant 0 : index
    %c0_14 = arith.constant 0 : index
    %c0_15 = arith.constant 0 : index
    %c2 = arith.constant 2 : index
    %11 = vector.load %arg2[%c0_13, %c0_14, %c0_15, %c2] : memref<1x1x32x384xbf16, #tpu.memory_space<vmem>>, vector<1x1x32x256xbf16>
    %12 = vector.shape_cast %11 : vector<1x1x32x256xbf16> to vector<32x256xbf16>
    %c2_16 = arith.constant 2 : index
    %c0_17 = arith.constant 0 : index
    %c0_18 = arith.constant 0 : index
    %13 = vector.load %arg3[%c2_16, %c0_17, %c0_18] : memref<9x32x32xbf16, #tpu.memory_space<vmem>>, vector<1x32x32xbf16>
    %14 = vector.shape_cast %13 : vector<1x32x32xbf16> to vector<32x32xbf16>
    %cst_19 = arith.constant dense<0.000000e+00> : vector<32x256xf32>
    %15 = tpu.matmul %14, %12, %cst_19 {dimension_numbers = #tpu.dot_dimension_numbers<[1], [0], [0], [1], [0, 0, 1, 1], [], []>} : vector<32x32xbf16>, vector<32x256xbf16>, vector<32x256xf32> -> vector<32x256xf32>
    %16 = arith.addf %10, %15 : vector<32x256xf32>
    %c0_20 = arith.constant 0 : index
    %c0_21 = arith.constant 0 : index
    %c0_22 = arith.constant 0 : index
    %c18 = arith.constant 18 : index
    %17 = vector.load %arg2[%c0_20, %c0_21, %c0_22, %c18] : memref<1x1x32x384xbf16, #tpu.memory_space<vmem>>, vector<1x1x32x256xbf16>
    %18 = vector.shape_cast %17 : vector<1x1x32x256xbf16> to vector<32x256xbf16>
    %c3 = arith.constant 3 : index
    %c0_23 = arith.constant 0 : index
    %c0_24 = arith.constant 0 : index
    %19 = vector.load %arg3[%c3, %c0_23, %c0_24] : memref<9x32x32xbf16, #tpu.memory_space<vmem>>, vector<1x32x32xbf16>
    %20 = vector.shape_cast %19 : vector<1x32x32xbf16> to vector<32x32xbf16>
    %cst_25 = arith.constant dense<0.000000e+00> : vector<32x256xf32>
    %21 = tpu.matmul %20, %18, %cst_25 {dimension_numbers = #tpu.dot_dimension_numbers<[1], [0], [0], [1], [0, 0, 1, 1], [], []>} : vector<32x32xbf16>, vector<32x256xbf16>, vector<32x256xf32> -> vector<32x256xf32>
    %22 = arith.addf %16, %21 : vector<32x256xf32>
    %c0_26 = arith.constant 0 : index
    %c0_27 = arith.constant 0 : index
    %c0_28 = arith.constant 0 : index
    %c19 = arith.constant 19 : index
    %23 = vector.load %arg2[%c0_26, %c0_27, %c0_28, %c19] : memref<1x1x32x384xbf16, #tpu.memory_space<vmem>>, vector<1x1x32x256xbf16>
    %24 = vector.shape_cast %23 : vector<1x1x32x256xbf16> to vector<32x256xbf16>
    %c4 = arith.constant 4 : index
    %c0_29 = arith.constant 0 : index
    %c0_30 = arith.constant 0 : index
    %25 = vector.load %arg3[%c4, %c0_29, %c0_30] : memref<9x32x32xbf16, #tpu.memory_space<vmem>>, vector<1x32x32xbf16>
    %26 = vector.shape_cast %25 : vector<1x32x32xbf16> to vector<32x32xbf16>
    %cst_31 = arith.constant dense<0.000000e+00> : vector<32x256xf32>
    %27 = tpu.matmul %26, %24, %cst_31 {dimension_numbers = #tpu.dot_dimension_numbers<[1], [0], [0], [1], [0, 0, 1, 1], [], []>} : vector<32x32xbf16>, vector<32x256xbf16>, vector<32x256xf32> -> vector<32x256xf32>
    %28 = arith.addf %22, %27 : vector<32x256xf32>
    %c0_32 = arith.constant 0 : index
    %c0_33 = arith.constant 0 : index
    %c0_34 = arith.constant 0 : index
    %c20 = arith.constant 20 : index
    %29 = vector.load %arg2[%c0_32, %c0_33, %c0_34, %c20] : memref<1x1x32x384xbf16, #tpu.memory_space<vmem>>, vector<1x1x32x256xbf16>
    %30 = vector.shape_cast %29 : vector<1x1x32x256xbf16> to vector<32x256xbf16>
    %c5 = arith.constant 5 : index
    %c0_35 = arith.constant 0 : index
    %c0_36 = arith.constant 0 : index
    %31 = vector.load %arg3[%c5, %c0_35, %c0_36] : memref<9x32x32xbf16, #tpu.memory_space<vmem>>, vector<1x32x32xbf16>
    %32 = vector.shape_cast %31 : vector<1x32x32xbf16> to vector<32x32xbf16>
    %cst_37 = arith.constant dense<0.000000e+00> : vector<32x256xf32>
    %33 = tpu.matmul %32, %30, %cst_37 {dimension_numbers = #tpu.dot_dimension_numbers<[1], [0], [0], [1], [0, 0, 1, 1], [], []>} : vector<32x32xbf16>, vector<32x256xbf16>, vector<32x256xf32> -> vector<32x256xf32>
    %34 = arith.addf %28, %33 : vector<32x256xf32>
    %c0_38 = arith.constant 0 : index
    %c0_39 = arith.constant 0 : index
    %c0_40 = arith.constant 0 : index
    %c36 = arith.constant 36 : index
    %35 = vector.load %arg2[%c0_38, %c0_39, %c0_40, %c36] : memref<1x1x32x384xbf16, #tpu.memory_space<vmem>>, vector<1x1x32x256xbf16>
    %36 = vector.shape_cast %35 : vector<1x1x32x256xbf16> to vector<32x256xbf16>
    %c6 = arith.constant 6 : index
    %c0_41 = arith.constant 0 : index
    %c0_42 = arith.constant 0 : index
    %37 = vector.load %arg3[%c6, %c0_41, %c0_42] : memref<9x32x32xbf16, #tpu.memory_space<vmem>>, vector<1x32x32xbf16>
    %38 = vector.shape_cast %37 : vector<1x32x32xbf16> to vector<32x32xbf16>
    %cst_43 = arith.constant dense<0.000000e+00> : vector<32x256xf32>
    %39 = tpu.matmul %38, %36, %cst_43 {dimension_numbers = #tpu.dot_dimension_numbers<[1], [0], [0], [1], [0, 0, 1, 1], [], []>} : vector<32x32xbf16>, vector<32x256xbf16>, vector<32x256xf32> -> vector<32x256xf32>
    %40 = arith.addf %34, %39 : vector<32x256xf32>
    %c0_44 = arith.constant 0 : index
    %c0_45 = arith.constant 0 : index
    %c0_46 = arith.constant 0 : index
    %c37 = arith.constant 37 : index
    %41 = vector.load %arg2[%c0_44, %c0_45, %c0_46, %c37] : memref<1x1x32x384xbf16, #tpu.memory_space<vmem>>, vector<1x1x32x256xbf16>
    %42 = vector.shape_cast %41 : vector<1x1x32x256xbf16> to vector<32x256xbf16>
    %c7 = arith.constant 7 : index
    %c0_47 = arith.constant 0 : index
    %c0_48 = arith.constant 0 : index
    %43 = vector.load %arg3[%c7, %c0_47, %c0_48] : memref<9x32x32xbf16, #tpu.memory_space<vmem>>, vector<1x32x32xbf16>
    %44 = vector.shape_cast %43 : vector<1x32x32xbf16> to vector<32x32xbf16>
    %cst_49 = arith.constant dense<0.000000e+00> : vector<32x256xf32>
    %45 = tpu.matmul %44, %42, %cst_49 {dimension_numbers = #tpu.dot_dimension_numbers<[1], [0], [0], [1], [0, 0, 1, 1], [], []>} : vector<32x32xbf16>, vector<32x256xbf16>, vector<32x256xf32> -> vector<32x256xf32>
    %46 = arith.addf %40, %45 : vector<32x256xf32>
    %c0_50 = arith.constant 0 : index
    %c0_51 = arith.constant 0 : index
    %c0_52 = arith.constant 0 : index
    %c38 = arith.constant 38 : index
    %47 = vector.load %arg2[%c0_50, %c0_51, %c0_52, %c38] : memref<1x1x32x384xbf16, #tpu.memory_space<vmem>>, vector<1x1x32x256xbf16>
    %48 = vector.shape_cast %47 : vector<1x1x32x256xbf16> to vector<32x256xbf16>
    %c8 = arith.constant 8 : index
    %c0_53 = arith.constant 0 : index
    %c0_54 = arith.constant 0 : index
    %49 = vector.load %arg3[%c8, %c0_53, %c0_54] : memref<9x32x32xbf16, #tpu.memory_space<vmem>>, vector<1x32x32xbf16>
    %50 = vector.shape_cast %49 : vector<1x32x32xbf16> to vector<32x32xbf16>
    %cst_55 = arith.constant dense<0.000000e+00> : vector<32x256xf32>
    %51 = tpu.matmul %50, %48, %cst_55 {dimension_numbers = #tpu.dot_dimension_numbers<[1], [0], [0], [1], [0, 0, 1, 1], [], []>} : vector<32x32xbf16>, vector<32x256xbf16>, vector<32x256xf32> -> vector<32x256xf32>
    %52 = arith.addf %46, %51 : vector<32x256xf32>
    %c0_56 = arith.constant 0 : index
    %c0_57 = arith.constant 0 : index
    %53 = vector.load %arg4[%c0_56, %c0_57] : memref<32x1xf32, #tpu.memory_space<vmem>>, vector<32x1xf32>
    %54 = vector.broadcast %53 : vector<32x1xf32> to vector<32x256xf32>
    %55 = arith.addf %52, %54 : vector<32x256xf32>
    %cst_58 = arith.constant 5.000000e-01 : f32
    %56 = vector.broadcast %cst_58 : f32 to vector<32x256xf32>
    %57 = arith.mulf %56, %55 : vector<32x256xf32>
    %cst_59 = arith.constant 0.707106769 : f32
    %58 = vector.broadcast %cst_59 : f32 to vector<32x256xf32>
    %59 = arith.mulf %55, %58 : vector<32x256xf32>
    %cst_60 = arith.constant 0.000000e+00 : f32
    %60 = vector.broadcast %cst_60 : f32 to vector<32x256xf32>
    %61 = arith.cmpf olt, %59, %60 : vector<32x256xf32>
    %cst_61 = arith.constant -1.000000e+00 : f32
    %cst_62 = arith.constant 1.000000e+00 : f32
    %62 = vector.broadcast %cst_61 : f32 to vector<32x256xf32>
    %63 = vector.broadcast %cst_62 : f32 to vector<32x256xf32>
    %64 = arith.select %61, %62, %63 : vector<32x256xi1>, vector<32x256xf32>
    %65 = math.absf %59 : vector<32x256xf32>
    %cst_63 = arith.constant 0.327591091 : f32
    %66 = vector.broadcast %cst_63 : f32 to vector<32x256xf32>
    %67 = arith.mulf %66, %65 : vector<32x256xf32>
    %cst_64 = arith.constant 1.000000e+00 : f32
    %68 = vector.broadcast %cst_64 : f32 to vector<32x256xf32>
    %69 = arith.addf %68, %67 : vector<32x256xf32>
    %cst_65 = arith.constant 1.000000e+00 : f32
    %70 = vector.broadcast %cst_65 : f32 to vector<32x256xf32>
    %71 = arith.divf %70, %69 : vector<32x256xf32>
    %cst_66 = arith.constant 1.06140542 : f32
    %72 = vector.broadcast %cst_66 : f32 to vector<32x256xf32>
    %73 = arith.mulf %71, %72 : vector<32x256xf32>
    %cst_67 = arith.constant -1.45315206 : f32
    %74 = vector.broadcast %cst_67 : f32 to vector<32x256xf32>
    %75 = arith.addf %74, %73 : vector<32x256xf32>
    %76 = arith.mulf %71, %75 : vector<32x256xf32>
    %cst_68 = arith.constant 1.42141378 : f32
    %77 = vector.broadcast %cst_68 : f32 to vector<32x256xf32>
    %78 = arith.addf %77, %76 : vector<32x256xf32>
    %79 = arith.mulf %71, %78 : vector<32x256xf32>
    %cst_69 = arith.constant -0.284496725 : f32
    %80 = vector.broadcast %cst_69 : f32 to vector<32x256xf32>
    %81 = arith.addf %80, %79 : vector<32x256xf32>
    %82 = arith.mulf %71, %81 : vector<32x256xf32>
    %cst_70 = arith.constant 0.254829586 : f32
    %83 = vector.broadcast %cst_70 : f32 to vector<32x256xf32>
    %84 = arith.addf %83, %82 : vector<32x256xf32>
    %85 = arith.mulf %71, %84 : vector<32x256xf32>
    %cst_71 = arith.constant 0.000000e+00 : f32
    %86 = vector.broadcast %cst_71 : f32 to vector<32x256xf32>
    %87 = arith.subf %86, %65 : vector<32x256xf32>
    %88 = arith.mulf %87, %65 : vector<32x256xf32>
    %89 = math.exp %88 : vector<32x256xf32>
    %90 = arith.mulf %85, %89 : vector<32x256xf32>
    %cst_72 = arith.constant 1.000000e+00 : f32
    %91 = vector.broadcast %cst_72 : f32 to vector<32x256xf32>
    %92 = arith.subf %91, %90 : vector<32x256xf32>
    %93 = arith.mulf %64, %92 : vector<32x256xf32>
    %cst_73 = arith.constant 1.000000e+00 : f32
    %94 = vector.broadcast %cst_73 : f32 to vector<32x256xf32>
    %95 = arith.addf %94, %93 : vector<32x256xf32>
    %96 = arith.mulf %57, %95 : vector<32x256xf32>
    %c0_74 = arith.constant 0 : index
    %c0_75 = arith.constant 0 : index
    %97 = vector.load %arg5[%c0_74, %c0_75] : memref<12x32xbf16, #tpu.memory_space<vmem>>, vector<12x32xbf16>
    %98 = arith.truncf %96 : vector<32x256xf32> to vector<32x256xbf16>
    %cst_76 = arith.constant dense<0.000000e+00> : vector<12x256xf32>
    %99 = tpu.matmul %97, %98, %cst_76 {dimension_numbers = #tpu.dot_dimension_numbers<[1], [0], [0], [1], [0, 0, 1, 1], [], []>} : vector<12x32xbf16>, vector<32x256xbf16>, vector<12x256xf32> -> vector<12x256xf32>
    %c0_77 = arith.constant 0 : index
    %c0_78 = arith.constant 0 : index
    %100 = vector.load %arg6[%c0_77, %c0_78] : memref<12x1xf32, #tpu.memory_space<vmem>>, vector<12x1xf32>
    %101 = vector.broadcast %100 : vector<12x1xf32> to vector<12x256xf32>
    %102 = arith.addf %99, %101 : vector<12x256xf32>
    %103 = arith.truncf %102 : vector<12x256xf32> to vector<12x256xbf16>
    %c0_79 = arith.constant 0 : index
    %c0_80 = arith.constant 0 : index
    %c0_81 = arith.constant 0 : index
    %c0_82 = arith.constant 0 : index
    %104 = vector.load %arg7[%c0_79, %c0_80, %c0_81, %c0_82] : memref<1x1x12x256xbf16, #tpu.memory_space<vmem>>, vector<1x1x12x256xbf16>
    %105 = vector.shape_cast %104 : vector<1x1x12x256xbf16> to vector<12x256xbf16>
    %106 = vector.shape_cast %103 : vector<12x256xbf16> to vector<1x1x12x256xbf16>
    tpu.vector_store %arg7[%c0_79, %c0_80, %c0_81, %c0_82], %106 {strides = array<i32>} : memref<1x1x12x256xbf16, #tpu.memory_space<vmem>>, vector<1x1x12x256xbf16>,
    return
  }
  func.func @transform_0(%arg0: i32, %arg1: i32) -> (i32, i32, i32, i32) {
    %c0_i32 = arith.constant 0 : i32
    %c0_i32_0 = arith.constant 0 : i32
    %c0_i32_1 = arith.constant 0 : i32
    return %arg0, %arg1, %c0_i32, %c0_i32_0 : i32, i32, i32, i32
  }
  func.func @transform_1(%arg0: i32, %arg1: i32) -> (i32, i32, i32) {
    %c0_i32 = arith.constant 0 : i32
    %c0_i32_0 = arith.constant 0 : i32
    %c0_i32_1 = arith.constant 0 : i32
    %c0_i32_2 = arith.constant 0 : i32
    return %c0_i32, %c0_i32_0, %c0_i32_1 : i32, i32, i32
  }
  func.func @transform_2(%arg0: i32, %arg1: i32) -> (i32, i32) {
    %c0_i32 = arith.constant 0 : i32
    %c0_i32_0 = arith.constant 0 : i32
    %c0_i32_1 = arith.constant 0 : i32
    return %c0_i32, %c0_i32_0 : i32, i32
  }
  func.func @transform_3(%arg0: i32, %arg1: i32) -> (i32, i32) {
    %c0_i32 = arith.constant 0 : i32
    %c0_i32_0 = arith.constant 0 : i32
    %c0_i32_1 = arith.constant 0 : i32
    return %c0_i32, %c0_i32_0 : i32, i32
  }
  func.func @transform_4(%arg0: i32, %arg1: i32) -> (i32, i32) {
    %c0_i32 = arith.constant 0 : i32
    %c0_i32_0 = arith.constant 0 : i32
    %c0_i32_1 = arith.constant 0 : i32
    return %c0_i32, %c0_i32_0 : i32, i32
  }
  func.func @transform_5(%arg0: i32, %arg1: i32) -> (i32, i32, i32, i32) {
    %c0_i32 = arith.constant 0 : i32
    %c0_i32_0 = arith.constant 0 : i32
    %c0_i32_1 = arith.constant 0 : i32
    return %arg0, %arg1, %c0_i32, %c0_i32_0 : i32, i32, i32, i32
  }
}

</mosaic_0001>

<llo_original>
// kernel: rgb_head_forward.1
$region0: #{rgb_head_forward.1}
  #allocation0 [shape = 'u32[]', space=smem, size = 0x4, offset = 0x4, fixed_abs, tag = 'smem constant byte address 0x4 - core index']
  #allocation1 [shape = 'u32[144,128]{1,0:T(1,128)}', space=vmem, size = 0x12000, scoped, tag = 'internal scratch']
  %s0 = inlined_call_operand.vmem [shape: bf16[2,2,32,384], index: 0, kind: input, shape index: {}]
  %s1 = inlined_call_operand.vmem [shape: bf16[9,32,32], index: 1, kind: input, shape index: {}]
  %s2 = inlined_call_operand.vmem [shape: f32[32,1], index: 2, kind: input, shape index: {}]
  %s3 = inlined_call_operand.vmem [shape: bf16[12,32], index: 3, kind: input, shape index: {}]
  %s4 = inlined_call_operand.vmem [shape: f32[12,1], index: 4, kind: input, shape index: {}]
  %s5 = inlined_call_operand.vmem [shape: bf16[2,2,12,256], index: 5, kind: output, shape index: {}]
  %s6 = sld [smem:[#allocation0]]
  $region53: #{rgb_head_forward.1} parent=0
    _
  %s8 = ssub.s32 1, %s6
  %s9 = scalar_select 0, %s8, %s6
  loop: start=0, step=1, limit=6
  $region2: #{rgb_head_forward.1} parent=0 // loop_pre_header
    _
  $region3: #{rgb_head_forward.1} parent=0 // loop_header
    %s11 = sphi 0, %s15
    %p12 = scmp.ge.s32.totalorder %s11, 6
    %s18 = sphi 0, %s30
    %s19 = sphi 0, %s26
    %s20 = sphi 0, %s18
    %s21 = sphi 0, %s19
    %s22 = sphi 0, %s20
    %s23 = sphi 0, %s21
    %s35 = sphi 0, %s37
    %s38 = sphi 0, %s35
    %s39 = sphi 0, %s38
    %s55 = sphi 0, %s39
    %s59 = sphi 0, %s59
    %s61 = sphi 0, %s59
    %s62 = sphi 0, %s61
    %s76 = sphi 0, %s62
    %s80 = sphi 0, %s80
    %s82 = sphi 0, %s80
    %s83 = sphi 0, %s82
    %s97 = sphi 0, %s83
    %s101 = sphi 0, %s101
    %s103 = sphi 0, %s101
    %s104 = sphi 0, %s103
    %s118 = sphi 0, %s104
    %s122 = sphi 0, %s122
    %s124 = sphi 0, %s122
    %s125 = sphi 0, %s124
    %s139 = sphi 0, %s125
    %s147 = sphi 0, %s149
    %s150 = sphi 0, %s147
    %s151 = sphi 0, %s150
    %s167 = sphi 0, %s151
  $region4: #{rgb_head_forward.1} parent=0 // loop_header_branch
    %14 = sbr.rel (%p12) target = $region8
  $region5: #{rgb_head_forward.1} parent=0 // loop_body
    %s16 = ssub.s32 %s11, 1
    %s17 = ssub.s32 %s11, 2
    %s24 = sadd.s32 1, %s19
    %p25 = scmp.ge.s32.totalorder %s24, 2
    %s26 = scalar_select %p25, 0, %s24
    %s27 = sadd.s32 1, %s18
    %s28 = scalar_select %p25, %s27, %s18
    %p29 = scmp.ge.s32.totalorder %s28, 2
    %s30 = scalar_select %p29, 0, %s28
    %s31 = ssub.s32 %s18, %s30
    %s32 = ssub.s32 %s19, %s26
    %s33 = sor.u32 %s31, %s32
    %p34 = scmp.eq.s32.totalorder %s33, 0
    %s36 = sadd.s32 %s35, 1
    %s37 = scalar_select %p34, %s35, %s36
    %p40 = pneg %p34
    %p41 = scmp.eq.s32.totalorder %s11, 3
    %p42 = por %p40, %p41
    %p43 = scmp.ne.s32.totalorder %s35, %s38
    %p44 = scmp.eq.s32.totalorder %s11, 0
    %p45 = por %p43, %p44
    %p46 = scmp.ne.s32.totalorder %s35, %s38
    %p47 = scmp.eq.s32.totalorder %s16, 3
    %p48 = por %p46, %p47
    %p49 = scmp.ne.s32.totalorder %s38, %s39
    %p50 = scmp.eq.s32.totalorder %s16, 0
    %p51 = por %p49, %p50
    %p52 = scmp.ne.s32.totalorder %s38, %s39
    %p53 = scmp.eq.s32.totalorder %s17, 3
    %p54 = por %p52, %p53
    %p56 = scmp.ne.s32.totalorder %s39, %s55
    %p57 = scmp.eq.s32.totalorder %s17, 0
    %p58 = por %p56, %p57
    %s60 = sadd.s32 %s59, 1
    %p63 = scmp.eq.s32.totalorder %s11, 3
    %p64 = scmp.ne.s32.totalorder %s59, %s61
    %p65 = scmp.eq.s32.totalorder %s11, 0
    %p66 = por %p64, %p65
    %p67 = scmp.ne.s32.totalorder %s59, %s61
    %p68 = scmp.eq.s32.totalorder %s16, 3
    %p69 = por %p67, %p68
    %p70 = scmp.ne.s32.totalorder %s61, %s62
    %p71 = scmp.eq.s32.totalorder %s16, 0
    %p72 = por %p70, %p71
    %p73 = scmp.ne.s32.totalorder %s61, %s62
    %p74 = scmp.eq.s32.totalorder %s17, 3
    %p75 = por %p73, %p74
    %p77 = scmp.ne.s32.totalorder %s62, %s76
    %p78 = scmp.eq.s32.totalorder %s17, 0
    %p79 = por %p77, %p78
    %s81 = sadd.s32 %s80, 1
    %p84 = scmp.eq.s32.totalorder %s11, 3
    %p85 = scmp.ne.s32.totalorder %s80, %s82
    %p86 = scmp.eq.s32.totalorder %s11, 0
    %p87 = por %p85, %p86
    %p88 = scmp.ne.s32.totalorder %s80, %s82
    %p89 = scmp.eq.s32.totalorder %s16, 3
    %p90 = por %p88, %p89
    %p91 = scmp.ne.s32.totalorder %s82, %s83
    %p92 = scmp.eq.s32.totalorder %s16, 0
    %p93 = por %p91, %p92
    %p94 = scmp.ne.s32.totalorder %s82, %s83
    %p95 = scmp.eq.s32.totalorder %s17, 3
    %p96 = por %p94, %p95
    %p98 = scmp.ne.s32.totalorder %s83, %s97
    %p99 = scmp.eq.s32.totalorder %s17, 0
    %p100 = por %p98, %p99
    %s102 = sadd.s32 %s101, 1
    %p105 = scmp.eq.s32.totalorder %s11, 3
    %p106 = scmp.ne.s32.totalorder %s101, %s103
    %p107 = scmp.eq.s32.totalorder %s11, 0
    %p108 = por %p106, %p107
    %p109 = scmp.ne.s32.totalorder %s101, %s103
    %p110 = scmp.eq.s32.totalorder %s16, 3
    %p111 = por %p109, %p110
    %p112 = scmp.ne.s32.totalorder %s103, %s104
    %p113 = scmp.eq.s32.totalorder %s16, 0
    %p114 = por %p112, %p113
    %p115 = scmp.ne.s32.totalorder %s103, %s104
    %p116 = scmp.eq.s32.totalorder %s17, 3
    %p117 = por %p115, %p116
    %p119 = scmp.ne.s32.totalorder %s104, %s118
    %p120 = scmp.eq.s32.totalorder %s17, 0
    %p121 = por %p119, %p120
    %s123 = sadd.s32 %s122, 1
    %p126 = scmp.eq.s32.totalorder %s11, 3
    %p127 = scmp.ne.s32.totalorder %s122, %s124
    %p128 = scmp.eq.s32.totalorder %s11, 0
    %p129 = por %p127, %p128
    %p130 = scmp.ne.s32.totalorder %s122, %s124
    %p131 = scmp.eq.s32.totalorder %s16, 3
    %p132 = por %p130, %p131
    %p133 = scmp.ne.s32.totalorder %s124, %s125
    %p134 = scmp.eq.s32.totalorder %s16, 0
    %p135 = por %p133, %p134
    %p136 = scmp.ne.s32.totalorder %s124, %s125
    %p137 = scmp.eq.s32.totalorder %s17, 3
    %p138 = por %p136, %p137
    %p140 = scmp.ne.s32.totalorder %s125, %s139
    %p141 = scmp.eq.s32.totalorder %s17, 0
    %p142 = por %p140, %p141
    %s143 = ssub.s32 %s18, %s30
    %s144 = ssub.s32 %s19, %s26
    %s145 = sor.u32 %s143, %s144
    %p146 = scmp.eq.s32.totalorder %s145, 0
    %s148 = sadd.s32 %s147, 1
    %s149 = scalar_select %p146, %s147, %s148
    %p152 = pneg %p146
    %p153 = scmp.eq.s32.totalorder %s11, 3
    %p154 = por %p152, %p153
    %p155 = scmp.ne.s32.totalorder %s147, %s150
    %p156 = scmp.eq.s32.totalorder %s11, 0
    %p157 = por %p155, %p156
    %p158 = scmp.ne.s32.totalorder %s147, %s150
    %p159 = scmp.eq.s32.totalorder %s16, 3
    %p160 = por %p158, %p159
    %p161 = scmp.ne.s32.totalorder %s150, %s151
    %p162 = scmp.eq.s32.totalorder %s16, 0
    %p163 = por %p161, %p162
    %p164 = scmp.ne.s32.totalorder %s150, %s151
    %p165 = scmp.eq.s32.totalorder %s17, 3
    %p166 = por %p164, %p165
    %p168 = scmp.ne.s32.totalorder %s151, %s167
    %p169 = scmp.eq.s32.totalorder %s17, 0
    %p170 = por %p168, %p169
    %p171 = scmp.le.s32.totalorder 1, %s11
    %p172 = scmp.lt.s32.totalorder %s11, 5
    %p173 = pnand %p171, %p172
    %p174 = pneg %p173
    // Predicated region
    $region9: #{rgb_head_forward.1} parent=5 // pred_check
      _
    $region10: #{rgb_head_forward.1} parent=5 // pred_check_branch
      %176 = sbr.rel (%p173) target = $region12
    $region11: #{rgb_head_forward.1} parent=5 // pred_region
      %s177 = ssub.s32 %s11, 1
      // Predicated region
      $region13: #{rgb_head_forward.1} parent=11 // pred_check
        %p178 = pneg %p72
      $region14: #{rgb_head_forward.1} parent=11 // pred_check_branch
        %180 = sbr.rel (%p178) target = $region16
      $region15: #{rgb_head_forward.1} parent=11 // pred_region
        _
      $region16: #{rgb_head_forward.1} parent=11 // pred_fallthru
        _
      // Predicated region
      $region17: #{rgb_head_forward.1} parent=11 // pred_check
        %p181 = pneg %p93
      $region18: #{rgb_head_forward.1} parent=11 // pred_check_branch
        %183 = sbr.rel (%p181) target = $region20
      $region19: #{rgb_head_forward.1} parent=11 // pred_region
        _
      $region20: #{rgb_head_forward.1} parent=11 // pred_fallthru
        _
      // Predicated region
      $region21: #{rgb_head_forward.1} parent=11 // pred_check
        %p184 = pneg %p114
      $region22: #{rgb_head_forward.1} parent=11 // pred_check_branch
        %186 = sbr.rel (%p184) target = $region24
      $region23: #{rgb_head_forward.1} parent=11 // pred_region
        _
      $region24: #{rgb_head_forward.1} parent=11 // pred_fallthru
        _
      // Predicated region
      $region25: #{rgb_head_forward.1} parent=11 // pred_check
        %p187 = pneg %p135
      $region26: #{rgb_head_forward.1} parent=11 // pred_check_branch
        %189 = sbr.rel (%p187) target = $region28
      $region27: #{rgb_head_forward.1} parent=11 // pred_region
        _
      $region28: #{rgb_head_forward.1} parent=11 // pred_fallthru
        _
    $region12: #{rgb_head_forward.1} parent=5 // pred_fallthru
      _
    %p190 = scmp.lt.s32.totalorder %s11, 4
    // Predicated region
    $region29: #{rgb_head_forward.1} parent=5 // pred_check
      %p191 = pneg %p190
    $region30: #{rgb_head_forward.1} parent=5 // pred_check_branch
      %193 = sbr.rel (%p191) target = $region32
    $region31: #{rgb_head_forward.1} parent=5 // pred_region
      // Predicated region
      $region33: #{rgb_head_forward.1} parent=31 // pred_check
        %p194 = pneg %p45
      $region34: #{rgb_head_forward.1} parent=31 // pred_check_branch
        %196 = sbr.rel (%p194) target = $region36
      $region35: #{rgb_head_forward.1} parent=31 // pred_region
        %p197 = scmp.lt.s32.totalorder %s18, 1
        %s198 = scalar_select %p197, %s18, 1
        %p199 = scmp.lt.s32.totalorder %s19, 1
        %s200 = scalar_select %p199, %s19, 1
        %s201 = smul.addr %s200, 12
        %s202 = smul.addr %s198, 24
        %s203 = sadd.s32 %s201, %s202
        %s204 = smul.addr %s203, 4
        %s205 = scalar_lea.vmem %s0, %s204
      $region36: #{rgb_head_forward.1} parent=31 // pred_fallthru
        _
    $region32: #{rgb_head_forward.1} parent=5 // pred_fallthru
      _
    %p206 = scmp.le.s32.totalorder 1, %s11
    %p207 = scmp.lt.s32.totalorder %s11, 5
    %p208 = pnand %p206, %p207
    %p209 = pneg %p208
    // Predicated region
    $region37: #{rgb_head_forward.1} parent=5 // pred_check
      _
    $region38: #{rgb_head_forward.1} parent=5 // pred_check_branch
      %211 = sbr.rel (%p208) target = $region40
    $region39: #{rgb_head_forward.1} parent=5 // pred_region
      %s212 = ssub.s32 %s11, 1
      %p213 = scmp.lt.s32.totalorder %s20, 1
      %s214 = scalar_select %p213, %s20, 1
      %p215 = scmp.lt.s32.totalorder %s21, 1
      %s216 = scalar_select %p215, %s21, 1
      %s217 = smul.addr %s216, 12
      %s218 = smul.addr %s214, 24
      %s219 = sadd.s32 %s217, %s218
      %s220 = smul.addr %s219, 4
      %s221 = scalar_lea.vmem %s0, %s220
      %p222 = pneg %p51
      %p223 = pneg %p48
      %p224 = pneg %p72
      %p225 = pneg %p69
      %p226 = pneg %p93
      %p227 = pneg %p90
      %p228 = pneg %p114
      %p229 = pneg %p111
      %p230 = pneg %p135
      %p231 = pneg %p132
      %p232 = pneg %p163
      %p233 = pneg %p160
      %p234 = scmp.lt.s32.totalorder %s20, 1
      %s235 = scalar_select %p234, %s20, 1
      %p236 = scmp.lt.s32.totalorder %s21, 1
      %s237 = scalar_select %p236, %s21, 1
      %s238 = smul.addr %s237, 4
      %s239 = smul.addr %s235, 8
      %s240 = sadd.s32 %s238, %s239
      %s241 = smul.addr %s240, 4
      %s242 = scalar_lea.vmem %s5, %s241
      %p243 = scmp.lt.s32.totalorder %s20, 1
      %s244 = scalar_select %p243, %s20, 1
      %p245 = scmp.lt.s32.totalorder %s21, 1
      %s246 = scalar_select %p245, %s21, 1
      %s247 = smul.addr %s246, 12
      %s248 = smul.addr %s244, 24
      %s249 = sadd.s32 %s247, %s248
      %s250 = smul.addr %s249, 4
      %s251 = scalar_lea.vmem %s0, %s250
      %p252 = scmp.lt.s32.totalorder %s20, 1
      %s253 = scalar_select %p252, %s20, 1
      %p254 = scmp.lt.s32.totalorder %s21, 1
      %s255 = scalar_select %p254, %s21, 1
      %s256 = smul.addr %s255, 4
      %s257 = smul.addr %s253, 8
      %s258 = sadd.s32 %s256, %s257
      %s259 = smul.addr %s258, 4
      %s260 = scalar_lea.vmem %s5, %s259
      %v262 = vld [vmem:[%s251] sm:$0xff]
      %v263 = vld [vmem:[%s251 + $0xc] sm:$0xff]
      %v264 = vld [vmem:[%s251 + $0x18] sm:$0xff]
      %v265 = vld [vmem:[%s251 + $0x24] sm:$0xff]
      %v266 = vld [vmem:[%s1] sm:$0xf]
      %v267 = vld [vmem:[%s1 + $0x4] sm:$0xf]
      %v268 = vld [vmem:[%s1 + $0x8] sm:$0xf]
      %v269 = vld [vmem:[%s1 + $0xc] sm:$0xf]
      %v270 = vld [vmem:[%s251] sm:$0xff]
      %v271 = vld [vmem:[%s251 + $0x8] sm:$0xf]
      %v272 = vld [vmem:[%s251 + $0xc] sm:$0xff]
      %v273 = vld [vmem:[%s251 + $0x14] sm:$0xf]
      %v274 = vld [vmem:[%s251 + $0x18] sm:$0xff]
      %v275 = vld [vmem:[%s251 + $0x20] sm:$0xf]
      %v276 = vld [vmem:[%s251 + $0x24] sm:$0xff]
      %v277 = vld [vmem:[%s251 + $0x2c] sm:$0xf]
      %s278 = scalar_lea.vmem %s1, 16
      %v279 = vld [vmem:[%s278] sm:$0xf]
      %v280 = vld [vmem:[%s278 + $0x4] sm:$0xf]
      %v281 = vld [vmem:[%s278 + $0x8] sm:$0xf]
      %v282 = vld [vmem:[%s278 + $0xc] sm:$0xf]
      %v287 = vunpack.c.l.b16 %v279
      %v288 = vunpack.c.l.b16 %v280
      %v289 = vunpack.c.l.b16 %v281
      %v290 = vunpack.c.l.b16 %v282
      %v291 = vpack.c.b16 %v288, %v287
      %v292 = vpack.c.b16 %v290, %v289
      %v301 = vunpack.c.l.b16 %v270
      %v302 = vunpack.c.h.b16 %v270
      %v303 = vunpack.c.l.b16 %v271
      %v304 = vunpack.c.l.b16 %v272
      %v305 = vunpack.c.h.b16 %v272
      %v306 = vunpack.c.l.b16 %v273
      %v307 = vunpack.c.l.b16 %v274
      %v308 = vunpack.c.h.b16 %v274
      %v309 = vunpack.c.l.b16 %v275
      %v310 = vunpack.c.l.b16 %v276
      %v311 = vunpack.c.h.b16 %v276
      %v312 = vunpack.c.l.b16 %v277
      %v313 = vpack.c.b16 %v304, %v301
      %v314 = vpack.c.b16 %v305, %v302
      %v315 = vpack.c.b16 %v306, %v303
      %v316 = vpack.c.b16 %v310, %v307
      %v317 = vpack.c.b16 %v311, %v308
      %v318 = vpack.c.b16 %v312, %v309
      %319 = vrot.lane.b32.xlu0 %v313, 127
      %v320 = vpop.permute.xlu0 %319
      %321 = vrot.lane.b32.xlu0 %v314, 127
      %v322 = vpop.permute.xlu0 %321
      %323 = vrot.lane.b32.xlu0 %v315, 127
      %v324 = vpop.permute.xlu0 %323
      %325 = vrot.lane.b32.xlu0 %v316, 127
      %v326 = vpop.permute.xlu0 %325
      %327 = vrot.lane.b32.xlu0 %v317, 127
      %v328 = vpop.permute.xlu0 %327
      %329 = vrot.lane.b32.xlu0 %v318, 127
      %v330 = vpop.permute.xlu0 %329
      %vm331 = vcmask 1039360
      %v332 = vsel %vm331, %v320, %v322
      %v333 = vsel %vm331, %v322, %v324
      %v334 = vsel %vm331, %v326, %v328
      %v335 = vsel %vm331, %v328, %v330
      %vm340 = vcmask 261120
      %v342 = vsel %vm340, %v291, 0
      %v345 = vsel %vm340, %v292, 0
      %347 = vmatprep.subr.bf16.mxu0 %v333
      %348 = vmatpush1.bf16.msra.mxu0 %v332
      %349 = vmatprep.subr.bf16.mxu0 %v335
      %350 = vmatpush1.bf16.msra.mxu0 %v334
      %351 = vmatprep.subr.bf16.mxu0 0
      %352 = vmatpush1.bf16.msra.mxu0 0
      %353 = vmatprep.subr.bf16.mxu0 0
      %354 = vmatpush1.bf16.msra.mxu0 0
      %355 = vmatprep.subr.bf16.mxu0 0
      %356 = vmatpush1.bf16.msra.mxu0 0
      %357 = vmatprep.subr.bf16.mxu0 0
      %358 = vmatpush1.bf16.msra.mxu0 0
      %359 = vmatprep.subr.bf16.mxu0 0
      %360 = vmatpush1.bf16.msra.mxu0 0
      %361 = vmatprep.subr.bf16.mxu0 0
      %362 = vmatpush1.bf16.msra.mxu0 0
      %363 = vmatprep.subr.bf16.mxu0 0
      %364 = vmatpush1.bf16.msra.mxu0 0
      %365 = vmatprep.subr.bf16.mxu0 0
      %366 = vmatpush1.bf16.msra.mxu0 0
      %367 = vmatprep.subr.bf16.mxu0 0
      %368 = vmatpush1.bf16.msra.mxu0 0
      %369 = vmatprep.subr.bf16.mxu0 0
      %370 = vmatpush1.bf16.msra.mxu0 0
      %371 = vmatprep.subr.bf16.mxu0 0
      %372 = vmatpush1.bf16.msra.mxu0 0
      %373 = vmatprep.subr.bf16.mxu0 0
      %374 = vmatpush1.bf16.msra.mxu0 0
      %375 = vmatprep.subr.bf16.mxu0 0
      %376 = vmatpush1.bf16.msra.mxu0 0
      %377 = vmatprep.subr.bf16.mxu0 0
      %378 = vmatpush1.bf16.msra.mxu0 0
      %379 = vmatprep.mubr.bf16.mxu0 0
      %380 = vmatmul.mubr.bf16.gmra.mrb[0].mxu0 %v342
      %v381 = vpop.f32.mrb[0].mxu0
      %v382 = vadd.f32 0.0, %v381
      %v383 = vpop.f32.mrb[0].mxu0
      %v384 = vadd.f32 0.0, %v383
      %v385 = vpop.f32.mrb[0].mxu0
      %v386 = vadd.f32 0.0, %v385
      %v387 = vpop.f32.mrb[0].mxu0
      %v388 = vadd.f32 0.0, %v387
      %389 = vmatprep.mubr.bf16.mxu0 0
      %390 = vmatmul.mubr.bf16.gmra.mrb[0].mxu0 %v345
      %v391 = vpop.f32.mrb[0].mxu0
      %v392 = vadd.f32 0.0, %v391
      %v393 = vpop.f32.mrb[0].mxu0
      %v394 = vadd.f32 0.0, %v393
      %v395 = vpop.f32.mrb[0].mxu0
      %v396 = vadd.f32 0.0, %v395
      %v397 = vpop.f32.mrb[0].mxu0
      %v398 = vadd.f32 0.0, %v397
      %399 = vdwg.mxu0
      %v404 = vunpack.c.l.b16 %v266
      %v405 = vunpack.c.l.b16 %v267
      %v406 = vunpack.c.l.b16 %v268
      %v407 = vunpack.c.l.b16 %v269
      %v408 = vpack.c.b16 %v405, %v404
      %v409 = vpack.c.b16 %v407, %v406
      %v414 = vunpack.c.l.b16 %v262
      %v415 = vunpack.c.h.b16 %v262
      %v416 = vunpack.c.l.b16 %v263
      %v417 = vunpack.c.h.b16 %v263
      %v418 = vunpack.c.l.b16 %v264
      %v419 = vunpack.c.h.b16 %v264
      %v420 = vunpack.c.l.b16 %v265
      %v421 = vunpack.c.h.b16 %v265
      %v422 = vpack.c.b16 %v416, %v414
      %v423 = vpack.c.b16 %v417, %v415
      %v424 = vpack.c.b16 %v420, %v418
      %v425 = vpack.c.b16 %v421, %v419
      %v431 = vsel %vm340, %v408, 0
      %v434 = vsel %vm340, %v409, 0
      %436 = vmatprep.subr.bf16.mxu0 %v423
      %437 = vmatpush1.bf16.msra.mxu0 %v422
      %438 = vmatprep.subr.bf16.mxu0 %v425
      %439 = vmatpush1.bf16.msra.mxu0 %v424
      %440 = vmatprep.subr.bf16.mxu0 0
      %441 = vmatpush1.bf16.msra.mxu0 0
      %442 = vmatprep.subr.bf16.mxu0 0
      %443 = vmatpush1.bf16.msra.mxu0 0
      %444 = vmatprep.subr.bf16.mxu0 0
      %445 = vmatpush1.bf16.msra.mxu0 0
      %446 = vmatprep.subr.bf16.mxu0 0
      %447 = vmatpush1.bf16.msra.mxu0 0
      %448 = vmatprep.subr.bf16.mxu0 0
      %449 = vmatpush1.bf16.msra.mxu0 0
      %450 = vmatprep.subr.bf16.mxu0 0
      %451 = vmatpush1.bf16.msra.mxu0 0
      %452 = vmatprep.subr.bf16.mxu0 0
      %453 = vmatpush1.bf16.msra.mxu0 0
      %454 = vmatprep.subr.bf16.mxu0 0
      %455 = vmatpush1.bf16.msra.mxu0 0
      %456 = vmatprep.subr.bf16.mxu0 0
      %457 = vmatpush1.bf16.msra.mxu0 0
      %458 = vmatprep.subr.bf16.mxu0 0
      %459 = vmatpush1.bf16.msra.mxu0 0
      %460 = vmatprep.subr.bf16.mxu0 0
      %461 = vmatpush1.bf16.msra.mxu0 0
      %462 = vmatprep.subr.bf16.mxu0 0
      %463 = vmatpush1.bf16.msra.mxu0 0
      %464 = vmatprep.subr.bf16.mxu0 0
      %465 = vmatpush1.bf16.msra.mxu0 0
      %466 = vmatprep.subr.bf16.mxu0 0
      %467 = vmatpush1.bf16.msra.mxu0 0
      %468 = vmatprep.mubr.bf16.mxu0 0
      %469 = vmatmul.mubr.bf16.gmra.mrb[0].mxu0 %v431
      %v470 = vpop.f32.mrb[0].mxu0
      %v471 = vadd.f32 %v382, %v470
      %v472 = vpop.f32.mrb[0].mxu0
      %v473 = vadd.f32 %v384, %v472
      %v474 = vpop.f32.mrb[0].mxu0
      %v475 = vadd.f32 %v386, %v474
      %v476 = vpop.f32.mrb[0].mxu0
      %v477 = vadd.f32 %v388, %v476
      %478 = vmatprep.mubr.bf16.mxu0 0
      %479 = vmatmul.mubr.bf16.gmra.mrb[0].mxu0 %v434
      %v480 = vpop.f32.mrb[0].mxu0
      %v481 = vadd.f32 %v392, %v480
      %v482 = vpop.f32.mrb[0].mxu0
      %v483 = vadd.f32 %v394, %v482
      %v484 = vpop.f32.mrb[0].mxu0
      %v485 = vadd.f32 %v396, %v484
      %v486 = vpop.f32.mrb[0].mxu0
      %v487 = vadd.f32 %v398, %v486
      %488 = vdwg.mxu0
      %s489 = scalar_lea.vmem %s1, 32
      %v490 = vld [vmem:[%s489] sm:$0xf]
      %v491 = vld [vmem:[%s489 + $0x4] sm:$0xf]
      %v492 = vld [vmem:[%s489 + $0x8] sm:$0xf]
      %v493 = vld [vmem:[%s489 + $0xc] sm:$0xf]
      %v498 = vunpack.c.l.b16 %v490
      %v499 = vunpack.c.l.b16 %v491
      %v500 = vunpack.c.l.b16 %v492
      %v501 = vunpack.c.l.b16 %v493
      %v502 = vpack.c.b16 %v499, %v498
      %v503 = vpack.c.b16 %v501, %v500
      %504 = vrot.lane.b32.xlu0 %v313, 126
      %v505 = vpop.permute.xlu0 %504
      %506 = vrot.lane.b32.xlu0 %v314, 126
      %v507 = vpop.permute.xlu0 %506
      %508 = vrot.lane.b32.xlu0 %v315, 126
      %v509 = vpop.permute.xlu0 %508
      %510 = vrot.lane.b32.xlu0 %v316, 126
      %v511 = vpop.permute.xlu0 %510
      %512 = vrot.lane.b32.xlu0 %v317, 126
      %v513 = vpop.permute.xlu0 %512
      %514 = vrot.lane.b32.xlu0 %v318, 126
      %v515 = vpop.permute.xlu0 %514
      %vm516 = vcmask 1031168
      %v517 = vsel %vm516, %v505, %v507
      %v518 = vsel %vm516, %v507, %v509
      %v519 = vsel %vm516, %v511, %v513
      %v520 = vsel %vm516, %v513, %v515
      %v526 = vsel %vm340, %v502, 0
      %v529 = vsel %vm340, %v503, 0
      %531 = vmatprep.subr.bf16.mxu0 %v518
      %532 = vmatpush1.bf16.msra.mxu0 %v517
      %533 = vmatprep.subr.bf16.mxu0 %v520
      %534 = vmatpush1.bf16.msra.mxu0 %v519
      %535 = vmatprep.subr.bf16.mxu0 0
      %536 = vmatpush1.bf16.msra.mxu0 0
      %537 = vmatprep.subr.bf16.mxu0 0
      %538 = vmatpush1.bf16.msra.mxu0 0
      %539 = vmatprep.subr.bf16.mxu0 0
      %540 = vmatpush1.bf16.msra.mxu0 0
      %541 = vmatprep.subr.bf16.mxu0 0
      %542 = vmatpush1.bf16.msra.mxu0 0
      %543 = vmatprep.subr.bf16.mxu0 0
      %544 = vmatpush1.bf16.msra.mxu0 0
      %545 = vmatprep.subr.bf16.mxu0 0
      %546 = vmatpush1.bf16.msra.mxu0 0
      %547 = vmatprep.subr.bf16.mxu0 0
      %548 = vmatpush1.bf16.msra.mxu0 0
      %549 = vmatprep.subr.bf16.mxu0 0
      %550 = vmatpush1.bf16.msra.mxu0 0
      %551 = vmatprep.subr.bf16.mxu0 0
      %552 = vmatpush1.bf16.msra.mxu0 0
      %553 = vmatprep.subr.bf16.mxu0 0
      %554 = vmatpush1.bf16.msra.mxu0 0
      %555 = vmatprep.subr.bf16.mxu0 0
      %556 = vmatpush1.bf16.msra.mxu0 0
      %557 = vmatprep.subr.bf16.mxu0 0
      %558 = vmatpush1.bf16.msra.mxu0 0
      %559 = vmatprep.subr.bf16.mxu0 0
      %560 = vmatpush1.bf16.msra.mxu0 0
      %561 = vmatprep.subr.bf16.mxu0 0
      %562 = vmatpush1.bf16.msra.mxu0 0
      %563 = vmatprep.mubr.bf16.mxu0 0
      %564 = vmatmul.mubr.bf16.gmra.mrb[0].mxu0 %v526
      %v565 = vpop.f32.mrb[0].mxu0
      %v566 = vadd.f32 0.0, %v565
      %v567 = vpop.f32.mrb[0].mxu0
      %v568 = vadd.f32 0.0, %v567
      %v569 = vpop.f32.mrb[0].mxu0
      %v570 = vadd.f32 0.0, %v569
      %v571 = vpop.f32.mrb[0].mxu0
      %v572 = vadd.f32 0.0, %v571
      %573 = vmatprep.mubr.bf16.mxu0 0
      %574 = vmatmul.mubr.bf16.gmra.mrb[0].mxu0 %v529
      %v575 = vpop.f32.mrb[0].mxu0
      %v576 = vadd.f32 0.0, %v575
      %v577 = vpop.f32.mrb[0].mxu0
      %v578 = vadd.f32 0.0, %v577
      %v579 = vpop.f32.mrb[0].mxu0
      %v580 = vadd.f32 0.0, %v579
      %v581 = vpop.f32.mrb[0].mxu0
      %v582 = vadd.f32 0.0, %v581
      %583 = vdwg.mxu0
      %v584 = vadd.f32 %v471, %v566
      %v585 = vadd.f32 %v473, %v568
      %v586 = vadd.f32 %v475, %v570
      %v587 = vadd.f32 %v477, %v572
      %v588 = vadd.f32 %v481, %v576
      %v589 = vadd.f32 %v483, %v578
      %v590 = vadd.f32 %v485, %v580
      %v591 = vadd.f32 %v487, %v582
      %s592 = scalar_lea.vmem %s1, 48
      %v593 = vld [vmem:[%s592] sm:$0xf]
      %v594 = vld [vmem:[%s592 + $0x4] sm:$0xf]
      %v595 = vld [vmem:[%s592 + $0x8] sm:$0xf]
      %v596 = vld [vmem:[%s592 + $0xc] sm:$0xf]
      %v601 = vunpack.c.l.b16 %v593
      %v602 = vunpack.c.l.b16 %v594
      %v603 = vunpack.c.l.b16 %v595
      %v604 = vunpack.c.l.b16 %v596
      %v605 = vpack.c.b16 %v602, %v601
      %v606 = vpack.c.b16 %v604, %v603
      %607 = vrot.lane.b32.xlu0 %v313, 110
      %v608 = vpop.permute.xlu0 %607
      %609 = vrot.lane.b32.xlu0 %v314, 110
      %v610 = vpop.permute.xlu0 %609
      %611 = vrot.lane.b32.xlu0 %v315, 110
      %v612 = vpop.permute.xlu0 %611
      %613 = vrot.lane.b32.xlu0 %v316, 110
      %v614 = vpop.permute.xlu0 %613
      %615 = vrot.lane.b32.xlu0 %v317, 110
      %v616 = vpop.permute.xlu0 %615
      %617 = vrot.lane.b32.xlu0 %v318, 110
      %v618 = vpop.permute.xlu0 %617
      %vm619 = vcmask 900096
      %v620 = vsel %vm619, %v608, %v610
      %v621 = vsel %vm619, %v610, %v612
      %v622 = vsel %vm619, %v614, %v616
      %v623 = vsel %vm619, %v616, %v618
      %v629 = vsel %vm340, %v605, 0
      %v632 = vsel %vm340, %v606, 0
      %634 = vmatprep.subr.bf16.mxu0 %v621
      %635 = vmatpush1.bf16.msra.mxu0 %v620
      %636 = vmatprep.subr.bf16.mxu0 %v623
      %637 = vmatpush1.bf16.msra.mxu0 %v622
      %638 = vmatprep.subr.bf16.mxu0 0
      %639 = vmatpush1.bf16.msra.mxu0 0
      %640 = vmatprep.subr.bf16.mxu0 0
      %641 = vmatpush1.bf16.msra.mxu0 0
      %642 = vmatprep.subr.bf16.mxu0 0
      %643 = vmatpush1.bf16.msra.mxu0 0
      %644 = vmatprep.subr.bf16.mxu0 0
      %645 = vmatpush1.bf16.msra.mxu0 0
      %646 = vmatprep.subr.bf16.mxu0 0
      %647 = vmatpush1.bf16.msra.mxu0 0
      %648 = vmatprep.subr.bf16.mxu0 0
      %649 = vmatpush1.bf16.msra.mxu0 0
      %650 = vmatprep.subr.bf16.mxu0 0
      %651 = vmatpush1.bf16.msra.mxu0 0
      %652 = vmatprep.subr.bf16.mxu0 0
      %653 = vmatpush1.bf16.msra.mxu0 0
      %654 = vmatprep.subr.bf16.mxu0 0
      %655 = vmatpush1.bf16.msra.mxu0 0
      %656 = vmatprep.subr.bf16.mxu0 0
      %657 = vmatpush1.bf16.msra.mxu0 0
      %658 = vmatprep.subr.bf16.mxu0 0
      %659 = vmatpush1.bf16.msra.mxu0 0
      %660 = vmatprep.subr.bf16.mxu0 0
      %661 = vmatpush1.bf16.msra.mxu0 0
      %662 = vmatprep.subr.bf16.mxu0 0
      %663 = vmatpush1.bf16.msra.mxu0 0
      %664 = vmatprep.subr.bf16.mxu0 0
      %665 = vmatpush1.bf16.msra.mxu0 0
      %666 = vmatprep.mubr.bf16.mxu0 0
      %667 = vmatmul.mubr.bf16.gmra.mrb[0].mxu0 %v629
      %v668 = vpop.f32.mrb[0].mxu0
      %v669 = vadd.f32 0.0, %v668
      %v670 = vpop.f32.mrb[0].mxu0
      %v671 = vadd.f32 0.0, %v670
      %v672 = vpop.f32.mrb[0].mxu0
      %v673 = vadd.f32 0.0, %v672
      %v674 = vpop.f32.mrb[0].mxu0
      %v675 = vadd.f32 0.0, %v674
      %676 = vmatprep.mubr.bf16.mxu0 0
      %677 = vmatmul.mubr.bf16.gmra.mrb[0].mxu0 %v632
      %v678 = vpop.f32.mrb[0].mxu0
      %v679 = vadd.f32 0.0, %v678
      %v680 = vpop.f32.mrb[0].mxu0
      %v681 = vadd.f32 0.0, %v680
      %v682 = vpop.f32.mrb[0].mxu0
      %v683 = vadd.f32 0.0, %v682
      %v684 = vpop.f32.mrb[0].mxu0
      %v685 = vadd.f32 0.0, %v684
      %686 = vdwg.mxu0
      %v687 = vadd.f32 %v584, %v669
      %v688 = vadd.f32 %v585, %v671
      %v689 = vadd.f32 %v586, %v673
      %v690 = vadd.f32 %v587, %v675
      %v691 = vadd.f32 %v588, %v679
      %v692 = vadd.f32 %v589, %v681
      %v693 = vadd.f32 %v590, %v683
      %v694 = vadd.f32 %v591, %v685
      %s695 = scalar_lea.vmem %s1, 64
      %v696 = vld [vmem:[%s695] sm:$0xf]
      %v697 = vld [vmem:[%s695 + $0x4] sm:$0xf]
      %v698 = vld [vmem:[%s695 + $0x8] sm:$0xf]
      %v699 = vld [vmem:[%s695 + $0xc] sm:$0xf]
      %v704 = vunpack.c.l.b16 %v696
      %v705 = vunpack.c.l.b16 %v697
      %v706 = vunpack.c.l.b16 %v698
      %v707 = vunpack.c.l.b16 %v699
      %v708 = vpack.c.b16 %v705, %v704
      %v709 = vpack.c.b16 %v707, %v706
      %710 = vrot.lane.b32.xlu0 %v313, 109
      %v711 = vpop.permute.xlu0 %710
      %712 = vrot.lane.b32.xlu0 %v314, 109
      %v713 = vpop.permute.xlu0 %712
      %714 = vrot.lane.b32.xlu0 %v315, 109
      %v715 = vpop.permute.xlu0 %714
      %716 = vrot.lane.b32.xlu0 %v316, 109
      %v717 = vpop.permute.xlu0 %716
      %718 = vrot.lane.b32.xlu0 %v317, 109
      %v719 = vpop.permute.xlu0 %718
      %720 = vrot.lane.b32.xlu0 %v318, 109
      %v721 = vpop.permute.xlu0 %720
      %vm722 = vcmask 891904
      %v723 = vsel %vm722, %v711, %v713
      %v724 = vsel %vm722, %v713, %v715
      %v725 = vsel %vm722, %v717, %v719
      %v726 = vsel %vm722, %v719, %v721
      %v732 = vsel %vm340, %v708, 0
      %v735 = vsel %vm340, %v709, 0
      %737 = vmatprep.subr.bf16.mxu0 %v724
      %738 = vmatpush1.bf16.msra.mxu0 %v723
      %739 = vmatprep.subr.bf16.mxu0 %v726
      %740 = vmatpush1.bf16.msra.mxu0 %v725
      %741 = vmatprep.subr.bf16.mxu0 0
      %742 = vmatpush1.bf16.msra.mxu0 0
      %743 = vmatprep.subr.bf16.mxu0 0
      %744 = vmatpush1.bf16.msra.mxu0 0
      %745 = vmatprep.subr.bf16.mxu0 0
      %746 = vmatpush1.bf16.msra.mxu0 0
      %747 = vmatprep.subr.bf16.mxu0 0
      %748 = vmatpush1.bf16.msra.mxu0 0
      %749 = vmatprep.subr.bf16.mxu0 0
      %750 = vmatpush1.bf16.msra.mxu0 0
      %751 = vmatprep.subr.bf16.mxu0 0
      %752 = vmatpush1.bf16.msra.mxu0 0
      %753 = vmatprep.subr.bf16.mxu0 0
      %754 = vmatpush1.bf16.msra.mxu0 0
      %755 = vmatprep.subr.bf16.mxu0 0
      %756 = vmatpush1.bf16.msra.mxu0 0
      %757 = vmatprep.subr.bf16.mxu0 0
      %758 = vmatpush1.bf16.msra.mxu0 0
      %759 = vmatprep.subr.bf16.mxu0 0
      %760 = vmatpush1.bf16.msra.mxu0 0
      %761 = vmatprep.subr.bf16.mxu0 0
      %762 = vmatpush1.bf16.msra.mxu0 0
      %763 = vmatprep.subr.bf16.mxu0 0
      %764 = vmatpush1.bf16.msra.mxu0 0
      %765 = vmatprep.subr.bf16.mxu0 0
      %766 = vmatpush1.bf16.msra.mxu0 0
      %767 = vmatprep.subr.bf16.mxu0 0
      %768 = vmatpush1.bf16.msra.mxu0 0
      %769 = vmatprep.mubr.bf16.mxu0 0
      %770 = vmatmul.mubr.bf16.gmra.mrb[0].mxu0 %v732
      %v771 = vpop.f32.mrb[0].mxu0
      %v772 = vadd.f32 0.0, %v771
      %v773 = vpop.f32.mrb[0].mxu0
      %v774 = vadd.f32 0.0, %v773
      %v775 = vpop.f32.mrb[0].mxu0
      %v776 = vadd.f32 0.0, %v775
      %v777 = vpop.f32.mrb[0].mxu0
      %v778 = vadd.f32 0.0, %v777
      %779 = vmatprep.mubr.bf16.mxu0 0
      %780 = vmatmul.mubr.bf16.gmra.mrb[0].mxu0 %v735
      %v781 = vpop.f32.mrb[0].mxu0
      %v782 = vadd.f32 0.0, %v781
      %v783 = vpop.f32.mrb[0].mxu0
      %v784 = vadd.f32 0.0, %v783
      %v785 = vpop.f32.mrb[0].mxu0
      %v786 = vadd.f32 0.0, %v785
      %v787 = vpop.f32.mrb[0].mxu0
      %v788 = vadd.f32 0.0, %v787
      %789 = vdwg.mxu0
      %v790 = vadd.f32 %v687, %v772
      %v791 = vadd.f32 %v688, %v774
      %v792 = vadd.f32 %v689, %v776
      %v793 = vadd.f32 %v690, %v778
      %v794 = vadd.f32 %v691, %v782
      %v795 = vadd.f32 %v692, %v784
      %v796 = vadd.f32 %v693, %v786
      %v797 = vadd.f32 %v694, %v788
      %s798 = scalar_lea.vmem %s1, 80
      %v799 = vld [vmem:[%s798] sm:$0xf]
      %v800 = vld [vmem:[%s798 + $0x4] sm:$0xf]
      %v801 = vld [vmem:[%s798 + $0x8] sm:$0xf]
      %v802 = vld [vmem:[%s798 + $0xc] sm:$0xf]
      %v807 = vunpack.c.l.b16 %v799
      %v808 = vunpack.c.l.b16 %v800
      %v809 = vunpack.c.l.b16 %v801
      %v810 = vunpack.c.l.b16 %v802
      %v811 = vpack.c.b16 %v808, %v807
      %v812 = vpack.c.b16 %v810, %v809
      %813 = vrot.lane.b32.xlu0 %v313, 108
      %v814 = vpop.permute.xlu0 %813
      %815 = vrot.lane.b32.xlu0 %v314, 108
      %v816 = vpop.permute.xlu0 %815
      %817 = vrot.lane.b32.xlu0 %v315, 108
      %v818 = vpop.permute.xlu0 %817
      %819 = vrot.lane.b32.xlu0 %v316, 108
      %v820 = vpop.permute.xlu0 %819
      %821 = vrot.lane.b32.xlu0 %v317, 108
      %v822 = vpop.permute.xlu0 %821
      %823 = vrot.lane.b32.xlu0 %v318, 108
      %v824 = vpop.permute.xlu0 %823
      %vm825 = vcmask 883712
      %v826 = vsel %vm825, %v814, %v816
      %v827 = vsel %vm825, %v816, %v818
      %v828 = vsel %vm825, %v820, %v822
      %v829 = vsel %vm825, %v822, %v824
      %v835 = vsel %vm340, %v811, 0
      %v838 = vsel %vm340, %v812, 0
      %840 = vmatprep.subr.bf16.mxu0 %v827
      %841 = vmatpush1.bf16.msra.mxu0 %v826
      %842 = vmatprep.subr.bf16.mxu0 %v829
      %843 = vmatpush1.bf16.msra.mxu0 %v828
      %844 = vmatprep.subr.bf16.mxu0 0
      %845 = vmatpush1.bf16.msra.mxu0 0
      %846 = vmatprep.subr.bf16.mxu0 0
      %847 = vmatpush1.bf16.msra.mxu0 0
      %848 = vmatprep.subr.bf16.mxu0 0
      %849 = vmatpush1.bf16.msra.mxu0 0
      %850 = vmatprep.subr.bf16.mxu0 0
      %851 = vmatpush1.bf16.msra.mxu0 0
      %852 = vmatprep.subr.bf16.mxu0 0
      %853 = vmatpush1.bf16.msra.mxu0 0
      %854 = vmatprep.subr.bf16.mxu0 0
      %855 = vmatpush1.bf16.msra.mxu0 0
      %856 = vmatprep.subr.bf16.mxu0 0
      %857 = vmatpush1.bf16.msra.mxu0 0
      %858 = vmatprep.subr.bf16.mxu0 0
      %859 = vmatpush1.bf16.msra.mxu0 0
      %860 = vmatprep.subr.bf16.mxu0 0
      %861 = vmatpush1.bf16.msra.mxu0 0
      %862 = vmatprep.subr.bf16.mxu0 0
      %863 = vmatpush1.bf16.msra.mxu0 0
      %864 = vmatprep.subr.bf16.mxu0 0
      %865 = vmatpush1.bf16.msra.mxu0 0
      %866 = vmatprep.subr.bf16.mxu0 0
      %867 = vmatpush1.bf16.msra.mxu0 0
      %868 = vmatprep.subr.bf16.mxu0 0
      %869 = vmatpush1.bf16.msra.mxu0 0
      %870 = vmatprep.subr.bf16.mxu0 0
      %871 = vmatpush1.bf16.msra.mxu0 0
      %872 = vmatprep.mubr.bf16.mxu0 0
      %873 = vmatmul.mubr.bf16.gmra.mrb[0].mxu0 %v835
      %v874 = vpop.f32.mrb[0].mxu0
      %v875 = vadd.f32 0.0, %v874
      %v876 = vpop.f32.mrb[0].mxu0
      %v877 = vadd.f32 0.0, %v876
      %v878 = vpop.f32.mrb[0].mxu0
      %v879 = vadd.f32 0.0, %v878
      %v880 = vpop.f32.mrb[0].mxu0
      %v881 = vadd.f32 0.0, %v880
      %882 = vmatprep.mubr.bf16.mxu0 0
      %883 = vmatmul.mubr.bf16.gmra.mrb[0].mxu0 %v838
      %v884 = vpop.f32.mrb[0].mxu0
      %v885 = vadd.f32 0.0, %v884
      %v886 = vpop.f32.mrb[0].mxu0
      %v887 = vadd.f32 0.0, %v886
      %v888 = vpop.f32.mrb[0].mxu0
      %v889 = vadd.f32 0.0, %v888
      %v890 = vpop.f32.mrb[0].mxu0
      %v891 = vadd.f32 0.0, %v890
      %892 = vdwg.mxu0
      %v893 = vadd.f32 %v790, %v875
      %v894 = vadd.f32 %v791, %v877
      %v895 = vadd.f32 %v792, %v879
      %v896 = vadd.f32 %v793, %v881
      %v897 = vadd.f32 %v794, %v885
      %v898 = vadd.f32 %v795, %v887
      %v899 = vadd.f32 %v796, %v889
      %v900 = vadd.f32 %v797, %v891
      %s901 = scalar_lea.vmem %s1, 96
      %v902 = vld [vmem:[%s901] sm:$0xf]
      %v903 = vld [vmem:[%s901 + $0x4] sm:$0xf]
      %v904 = vld [vmem:[%s901 + $0x8] sm:$0xf]
      %v905 = vld [vmem:[%s901 + $0xc] sm:$0xf]
      %v910 = vunpack.c.l.b16 %v902
      %v911 = vunpack.c.l.b16 %v903
      %v912 = vunpack.c.l.b16 %v904
      %v913 = vunpack.c.l.b16 %v905
      %v914 = vpack.c.b16 %v911, %v910
      %v915 = vpack.c.b16 %v913, %v912
      %916 = vrot.lane.b32.xlu0 %v313, 92
      %v917 = vpop.permute.xlu0 %916
      %918 = vrot.lane.b32.xlu0 %v314, 92
      %v919 = vpop.permute.xlu0 %918
      %920 = vrot.lane.b32.xlu0 %v315, 92
      %v921 = vpop.permute.xlu0 %920
      %922 = vrot.lane.b32.xlu0 %v316, 92
      %v923 = vpop.permute.xlu0 %922
      %924 = vrot.lane.b32.xlu0 %v317, 92
      %v925 = vpop.permute.xlu0 %924
      %926 = vrot.lane.b32.xlu0 %v318, 92
      %v927 = vpop.permute.xlu0 %926
      %vm928 = vcmask 752640
      %v929 = vsel %vm928, %v917, %v919
      %v930 = vsel %vm928, %v919, %v921
      %v931 = vsel %vm928, %v923, %v925
      %v932 = vsel %vm928, %v925, %v927
      %v938 = vsel %vm340, %v914, 0
      %v941 = vsel %vm340, %v915, 0
      %943 = vmatprep.subr.bf16.mxu0 %v930
      %944 = vmatpush1.bf16.msra.mxu0 %v929
      %945 = vmatprep.subr.bf16.mxu0 %v932
      %946 = vmatpush1.bf16.msra.mxu0 %v931
      %947 = vmatprep.subr.bf16.mxu0 0
      %948 = vmatpush1.bf16.msra.mxu0 0
      %949 = vmatprep.subr.bf16.mxu0 0
      %950 = vmatpush1.bf16.msra.mxu0 0
      %951 = vmatprep.subr.bf16.mxu0 0
      %952 = vmatpush1.bf16.msra.mxu0 0
      %953 = vmatprep.subr.bf16.mxu0 0
      %954 = vmatpush1.bf16.msra.mxu0 0
      %955 = vmatprep.subr.bf16.mxu0 0
      %956 = vmatpush1.bf16.msra.mxu0 0
      %957 = vmatprep.subr.bf16.mxu0 0
      %958 = vmatpush1.bf16.msra.mxu0 0
      %959 = vmatprep.subr.bf16.mxu0 0
      %960 = vmatpush1.bf16.msra.mxu0 0
      %961 = vmatprep.subr.bf16.mxu0 0
      %962 = vmatpush1.bf16.msra.mxu0 0
      %963 = vmatprep.subr.bf16.mxu0 0
      %964 = vmatpush1.bf16.msra.mxu0 0
      %965 = vmatprep.subr.bf16.mxu0 0
      %966 = vmatpush1.bf16.msra.mxu0 0
      %967 = vmatprep.subr.bf16.mxu0 0
      %968 = vmatpush1.bf16.msra.mxu0 0
      %969 = vmatprep.subr.bf16.mxu0 0
      %970 = vmatpush1.bf16.msra.mxu0 0
      %971 = vmatprep.subr.bf16.mxu0 0
      %972 = vmatpush1.bf16.msra.mxu0 0
      %973 = vmatprep.subr.bf16.mxu0 0
      %974 = vmatpush1.bf16.msra.mxu0 0
      %975 = vmatprep.mubr.bf16.mxu0 0
      %976 = vmatmul.mubr.bf16.gmra.mrb[0].mxu0 %v938
      %v977 = vpop.f32.mrb[0].mxu0
      %v978 = vadd.f32 0.0, %v977
      %v979 = vpop.f32.mrb[0].mxu0
      %v980 = vadd.f32 0.0, %v979
      %v981 = vpop.f32.mrb[0].mxu0
      %v982 = vadd.f32 0.0, %v981
      %v983 = vpop.f32.mrb[0].mxu0
      %v984 = vadd.f32 0.0, %v983
      %985 = vmatprep.mubr.bf16.mxu0 0
      %986 = vmatmul.mubr.bf16.gmra.mrb[0].mxu0 %v941
      %v987 = vpop.f32.mrb[0].mxu0
      %v988 = vadd.f32 0.0, %v987
      %v989 = vpop.f32.mrb[0].mxu0
      %v990 = vadd.f32 0.0, %v989
      %v991 = vpop.f32.mrb[0].mxu0
      %v992 = vadd.f32 0.0, %v991
      %v993 = vpop.f32.mrb[0].mxu0
      %v994 = vadd.f32 0.0, %v993
      %995 = vdwg.mxu0
      %v996 = vadd.f32 %v893, %v978
      %v997 = vadd.f32 %v894, %v980
      %v998 = vadd.f32 %v895, %v982
      %v999 = vadd.f32 %v896, %v984
      %v1000 = vadd.f32 %v897, %v988
      %v1001 = vadd.f32 %v898, %v990
      %v1002 = vadd.f32 %v899, %v992
      %v1003 = vadd.f32 %v900, %v994
      %s1004 = scalar_lea.vmem %s1, 112
      %v1005 = vld [vmem:[%s1004] sm:$0xf]
      %v1006 = vld [vmem:[%s1004 + $0x4] sm:$0xf]
      %v1007 = vld [vmem:[%s1004 + $0x8] sm:$0xf]
      %v1008 = vld [vmem:[%s1004 + $0xc] sm:$0xf]
      %v1013 = vunpack.c.l.b16 %v1005
      %v1014 = vunpack.c.l.b16 %v1006
      %v1015 = vunpack.c.l.b16 %v1007
      %v1016 = vunpack.c.l.b16 %v1008
      %v1017 = vpack.c.b16 %v1014, %v1013
      %v1018 = vpack.c.b16 %v1016, %v1015
      %1019 = vrot.lane.b32.xlu0 %v313, 91
      %v1020 = vpop.permute.xlu0 %1019
      %1021 = vrot.lane.b32.xlu0 %v314, 91
      %v1022 = vpop.permute.xlu0 %1021
      %1023 = vrot.lane.b32.xlu0 %v315, 91
      %v1024 = vpop.permute.xlu0 %1023
      %1025 = vrot.lane.b32.xlu0 %v316, 91
      %v1026 = vpop.permute.xlu0 %1025
      %1027 = vrot.lane.b32.xlu0 %v317, 91
      %v1028 = vpop.permute.xlu0 %1027
      %1029 = vrot.lane.b32.xlu0 %v318, 91
      %v1030 = vpop.permute.xlu0 %1029
      %vm1031 = vcmask 744448
      %v1032 = vsel %vm1031, %v1020, %v1022
      %v1033 = vsel %vm1031, %v1022, %v1024
      %v1034 = vsel %vm1031, %v1026, %v1028
      %v1035 = vsel %vm1031, %v1028, %v1030
      %v1041 = vsel %vm340, %v1017, 0
      %v1044 = vsel %vm340, %v1018, 0
      %1046 = vmatprep.subr.bf16.mxu0 %v1033
      %1047 = vmatpush1.bf16.msra.mxu0 %v1032
      %1048 = vmatprep.subr.bf16.mxu0 %v1035
      %1049 = vmatpush1.bf16.msra.mxu0 %v1034
      %1050 = vmatprep.subr.bf16.mxu0 0
      %1051 = vmatpush1.bf16.msra.mxu0 0
      %1052 = vmatprep.subr.bf16.mxu0 0
      %1053 = vmatpush1.bf16.msra.mxu0 0
      %1054 = vmatprep.subr.bf16.mxu0 0
      %1055 = vmatpush1.bf16.msra.mxu0 0
      %1056 = vmatprep.subr.bf16.mxu0 0
      %1057 = vmatpush1.bf16.msra.mxu0 0
      %1058 = vmatprep.subr.bf16.mxu0 0
      %1059 = vmatpush1.bf16.msra.mxu0 0
      %1060 = vmatprep.subr.bf16.mxu0 0
      %1061 = vmatpush1.bf16.msra.mxu0 0
      %1062 = vmatprep.subr.bf16.mxu0 0
      %1063 = vmatpush1.bf16.msra.mxu0 0
      %1064 = vmatprep.subr.bf16.mxu0 0
      %1065 = vmatpush1.bf16.msra.mxu0 0
      %1066 = vmatprep.subr.bf16.mxu0 0
      %1067 = vmatpush1.bf16.msra.mxu0 0
      %1068 = vmatprep.subr.bf16.mxu0 0
      %1069 = vmatpush1.bf16.msra.mxu0 0
      %1070 = vmatprep.subr.bf16.mxu0 0
      %1071 = vmatpush1.bf16.msra.mxu0 0
      %1072 = vmatprep.subr.bf16.mxu0 0
      %1073 = vmatpush1.bf16.msra.mxu0 0
      %1074 = vmatprep.subr.bf16.mxu0 0
      %1075 = vmatpush1.bf16.msra.mxu0 0
      %1076 = vmatprep.subr.bf16.mxu0 0
      %1077 = vmatpush1.bf16.msra.mxu0 0
      %1078 = vmatprep.mubr.bf16.mxu0 0
      %1079 = vmatmul.mubr.bf16.gmra.mrb[0].mxu0 %v1041
      %v1080 = vpop.f32.mrb[0].mxu0
      %v1081 = vadd.f32 0.0, %v1080
      %v1082 = vpop.f32.mrb[0].mxu0
      %v1083 = vadd.f32 0.0, %v1082
      %v1084 = vpop.f32.mrb[0].mxu0
      %v1085 = vadd.f32 0.0, %v1084
      %v1086 = vpop.f32.mrb[0].mxu0
      %v1087 = vadd.f32 0.0, %v1086
      %1088 = vmatprep.mubr.bf16.mxu0 0
      %1089 = vmatmul.mubr.bf16.gmra.mrb[0].mxu0 %v1044
      %v1090 = vpop.f32.mrb[0].mxu0
      %v1091 = vadd.f32 0.0, %v1090
      %v1092 = vpop.f32.mrb[0].mxu0
      %v1093 = vadd.f32 0.0, %v1092
      %v1094 = vpop.f32.mrb[0].mxu0
      %v1095 = vadd.f32 0.0, %v1094
      %v1096 = vpop.f32.mrb[0].mxu0
      %v1097 = vadd.f32 0.0, %v1096
      %1098 = vdwg.mxu0
      %v1099 = vadd.f32 %v996, %v1081
      %v1100 = vadd.f32 %v997, %v1083
      %v1101 = vadd.f32 %v998, %v1085
      %v1102 = vadd.f32 %v999, %v1087
      %v1103 = vadd.f32 %v1000, %v1091
      %v1104 = vadd.f32 %v1001, %v1093
      %v1105 = vadd.f32 %v1002, %v1095
      %v1106 = vadd.f32 %v1003, %v1097
      %s1107 = scalar_lea.vmem %s1, 128
      %v1108 = vld [vmem:[%s1107] sm:$0xf]
      %v1109 = vld [vmem:[%s1107 + $0x4] sm:$0xf]
      %v1110 = vld [vmem:[%s1107 + $0x8] sm:$0xf]
      %v1111 = vld [vmem:[%s1107 + $0xc] sm:$0xf]
      %v1116 = vunpack.c.l.b16 %v1108
      %v1117 = vunpack.c.l.b16 %v1109
      %v1118 = vunpack.c.l.b16 %v1110
      %v1119 = vunpack.c.l.b16 %v1111
      %v1120 = vpack.c.b16 %v1117, %v1116
      %v1121 = vpack.c.b16 %v1119, %v1118
      %1122 = vrot.lane.b32.xlu0 %v313, 90
      %v1123 = vpop.permute.xlu0 %1122
      %1124 = vrot.lane.b32.xlu0 %v314, 90
      %v1125 = vpop.permute.xlu0 %1124
      %1126 = vrot.lane.b32.xlu0 %v315, 90
      %v1127 = vpop.permute.xlu0 %1126
      %1128 = vrot.lane.b32.xlu0 %v316, 90
      %v1129 = vpop.permute.xlu0 %1128
      %1130 = vrot.lane.b32.xlu0 %v317, 90
      %v1131 = vpop.permute.xlu0 %1130
      %1132 = vrot.lane.b32.xlu0 %v318, 90
      %v1133 = vpop.permute.xlu0 %1132
      %vm1134 = vcmask 736256
      %v1135 = vsel %vm1134, %v1123, %v1125
      %v1136 = vsel %vm1134, %v1125, %v1127
      %v1137 = vsel %vm1134, %v1129, %v1131
      %v1138 = vsel %vm1134, %v1131, %v1133
      %v1144 = vsel %vm340, %v1120, 0
      %v1147 = vsel %vm340, %v1121, 0
      %1149 = vmatprep.subr.bf16.mxu0 %v1136
      %1150 = vmatpush1.bf16.msra.mxu0 %v1135
      %1151 = vmatprep.subr.bf16.mxu0 %v1138
      %1152 = vmatpush1.bf16.msra.mxu0 %v1137
      %1153 = vmatprep.subr.bf16.mxu0 0
      %1154 = vmatpush1.bf16.msra.mxu0 0
      %1155 = vmatprep.subr.bf16.mxu0 0
      %1156 = vmatpush1.bf16.msra.mxu0 0
      %1157 = vmatprep.subr.bf16.mxu0 0
      %1158 = vmatpush1.bf16.msra.mxu0 0
      %1159 = vmatprep.subr.bf16.mxu0 0
      %1160 = vmatpush1.bf16.msra.mxu0 0
      %1161 = vmatprep.subr.bf16.mxu0 0
      %1162 = vmatpush1.bf16.msra.mxu0 0
      %1163 = vmatprep.subr.bf16.mxu0 0
      %1164 = vmatpush1.bf16.msra.mxu0 0
      %1165 = vmatprep.subr.bf16.mxu0 0
      %1166 = vmatpush1.bf16.msra.mxu0 0
      %1167 = vmatprep.subr.bf16.mxu0 0
      %1168 = vmatpush1.bf16.msra.mxu0 0
      %1169 = vmatprep.subr.bf16.mxu0 0
      %1170 = vmatpush1.bf16.msra.mxu0 0
      %1171 = vmatprep.subr.bf16.mxu0 0
      %1172 = vmatpush1.bf16.msra.mxu0 0
      %1173 = vmatprep.subr.bf16.mxu0 0
      %1174 = vmatpush1.bf16.msra.mxu0 0
      %1175 = vmatprep.subr.bf16.mxu0 0
      %1176 = vmatpush1.bf16.msra.mxu0 0
      %1177 = vmatprep.subr.bf16.mxu0 0
      %1178 = vmatpush1.bf16.msra.mxu0 0
      %1179 = vmatprep.subr.bf16.mxu0 0
      %1180 = vmatpush1.bf16.msra.mxu0 0
      %1181 = vmatprep.mubr.bf16.mxu0 0
      %1182 = vmatmul.mubr.bf16.gmra.mrb[0].mxu0 %v1144
      %v1183 = vpop.f32.mrb[0].mxu0
      %v1184 = vadd.f32 0.0, %v1183
      %v1185 = vpop.f32.mrb[0].mxu0
      %v1186 = vadd.f32 0.0, %v1185
      %v1187 = vpop.f32.mrb[0].mxu0
      %v1188 = vadd.f32 0.0, %v1187
      %v1189 = vpop.f32.mrb[0].mxu0
      %v1190 = vadd.f32 0.0, %v1189
      %1191 = vmatprep.mubr.bf16.mxu0 0
      %1192 = vmatmul.mubr.bf16.gmra.mrb[0].mxu0 %v1147
      %v1193 = vpop.f32.mrb[0].mxu0
      %v1194 = vadd.f32 0.0, %v1193
      %v1195 = vpop.f32.mrb[0].mxu0
      %v1196 = vadd.f32 0.0, %v1195
      %v1197 = vpop.f32.mrb[0].mxu0
      %v1198 = vadd.f32 0.0, %v1197
      %v1199 = vpop.f32.mrb[0].mxu0
      %v1200 = vadd.f32 0.0, %v1199
      %1201 = vdwg.mxu0
      %v1202 = vadd.f32 %v1099, %v1184
      %v1203 = vadd.f32 %v1100, %v1186
      %v1204 = vadd.f32 %v1101, %v1188
      %v1205 = vadd.f32 %v1102, %v1190
      %v1206 = vadd.f32 %v1103, %v1194
      %v1207 = vadd.f32 %v1104, %v1196
      %v1208 = vadd.f32 %v1105, %v1198
      %v1209 = vadd.f32 %v1106, %v1200
      %v1210 = vld [vmem:[%s2] sm:$0xff]
      %v1211 = vld [vmem:[%s2 + $0x8] sm:$0xff]
      %v1212 = vld [vmem:[%s2 + $0x10] sm:$0xff]
      %v1213 = vld [vmem:[%s2 + $0x18] sm:$0xff]
      %1215 = vset.pattern.permute.xlu0 0
      %1216 = vperm.xlu0 %1215, %v1210
      %v1217 = vpop.permute.xlu0 %1216
      %1220 = vset.pattern.permute.xlu0 0
      %1221 = vperm.xlu0 %1220, %v1211
      %v1222 = vpop.permute.xlu0 %1221
      %1225 = vset.pattern.permute.xlu0 0
      %1226 = vperm.xlu0 %1225, %v1212
      %v1227 = vpop.permute.xlu0 %1226
      %1230 = vset.pattern.permute.xlu0 0
      %1231 = vperm.xlu0 %1230, %v1213
      %v1232 = vpop.permute.xlu0 %1231
      %v1234 = vadd.f32 %v1202, %v1217
      %v1235 = vadd.f32 %v1203, %v1217
      %v1236 = vadd.f32 %v1204, %v1222
      %v1237 = vadd.f32 %v1205, %v1222
      %v1238 = vadd.f32 %v1206, %v1227
      %v1239 = vadd.f32 %v1207, %v1227
      %v1240 = vadd.f32 %v1208, %v1232
      %v1241 = vadd.f32 %v1209, %v1232
      %v1242 = vmul.f32 %v1234, 0.5
      %v1243 = vmul.f32 %v1235, 0.5
      %v1244 = vmul.f32 %v1236, 0.5
      %v1245 = vmul.f32 %v1237, 0.5
      %v1246 = vmul.f32 %v1238, 0.5
      %v1247 = vmul.f32 %v1239, 0.5
      %v1248 = vmul.f32 %v1240, 0.5
      %v1249 = vmul.f32 %v1241, 0.5
      %v1250 = vmul.f32 %v1234, 0.70710677
      %v1251 = vmul.f32 %v1235, 0.70710677
      %v1252 = vmul.f32 %v1236, 0.70710677
      %v1253 = vmul.f32 %v1237, 0.70710677
      %v1254 = vmul.f32 %v1238, 0.70710677
      %v1255 = vmul.f32 %v1239, 0.70710677
      %v1256 = vmul.f32 %v1240, 0.70710677
      %v1257 = vmul.f32 %v1241, 0.70710677
      %vm1258 = vcmp.lt.f32.partialorder %v1250, 0.0
      %vm1259 = vcmp.lt.f32.partialorder %v1251, 0.0
      %vm1260 = vcmp.lt.f32.partialorder %v1252, 0.0
      %vm1261 = vcmp.lt.f32.partialorder %v1253, 0.0
      %vm1262 = vcmp.lt.f32.partialorder %v1254, 0.0
      %vm1263 = vcmp.lt.f32.partialorder %v1255, 0.0
      %vm1264 = vcmp.lt.f32.partialorder %v1256, 0.0
      %vm1265 = vcmp.lt.f32.partialorder %v1257, 0.0
      %v1266 = vsel %vm1258, -1.0, 1.0
      %v1267 = vsel %vm1259, -1.0, 1.0
      %v1268 = vsel %vm1260, -1.0, 1.0
      %v1269 = vsel %vm1261, -1.0, 1.0
      %v1270 = vsel %vm1262, -1.0, 1.0
      %v1271 = vsel %vm1263, -1.0, 1.0
      %v1272 = vsel %vm1264, -1.0, 1.0
      %v1273 = vsel %vm1265, -1.0, 1.0
      %v1274 = vand.u32 2147483647, %v1250
      %v1275 = vand.u32 2147483647, %v1251
      %v1276 = vand.u32 2147483647, %v1252
      %v1277 = vand.u32 2147483647, %v1253
      %v1278 = vand.u32 2147483647, %v1254
      %v1279 = vand.u32 2147483647, %v1255
      %v1280 = vand.u32 2147483647, %v1256
      %v1281 = vand.u32 2147483647, %v1257
      %v1282 = vmul.f32 %v1274, 0.3275911
      %v1283 = vmul.f32 %v1275, 0.3275911
      %v1284 = vmul.f32 %v1276, 0.3275911
      %v1285 = vmul.f32 %v1277, 0.3275911
      %v1286 = vmul.f32 %v1278, 0.3275911
      %v1287 = vmul.f32 %v1279, 0.3275911
      %v1288 = vmul.f32 %v1280, 0.3275911
      %v1289 = vmul.f32 %v1281, 0.3275911
      %v1290 = vadd.f32 %v1282, 1.0
      %v1291 = vadd.f32 %v1283, 1.0
      %v1292 = vadd.f32 %v1284, 1.0
      %v1293 = vadd.f32 %v1285, 1.0
      %v1294 = vadd.f32 %v1286, 1.0
      %v1295 = vadd.f32 %v1287, 1.0
      %v1296 = vadd.f32 %v1288, 1.0
      %v1297 = vadd.f32 %v1289, 1.0
      %v1298 = vrcp.pop %v1290
      %v1299 = vmul.f32 1.0, %v1298
      %v1300 = vrcp.pop %v1291
      %v1301 = vmul.f32 1.0, %v1300
      %v1302 = vrcp.pop %v1292
      %v1303 = vmul.f32 1.0, %v1302
      %v1304 = vrcp.pop %v1293
      %v1305 = vmul.f32 1.0, %v1304
      %v1306 = vrcp.pop %v1294
      %v1307 = vmul.f32 1.0, %v1306
      %v1308 = vrcp.pop %v1295
      %v1309 = vmul.f32 1.0, %v1308
      %v1310 = vrcp.pop %v1296
      %v1311 = vmul.f32 1.0, %v1310
      %v1312 = vrcp.pop %v1297
      %v1313 = vmul.f32 1.0, %v1312
      %v1314 = vmul.f32 %v1299, 1.0614054
      %v1315 = vmul.f32 %v1301, 1.0614054
      %v1316 = vmul.f32 %v1303, 1.0614054
      %v1317 = vmul.f32 %v1305, 1.0614054
      %v1318 = vmul.f32 %v1307, 1.0614054
      %v1319 = vmul.f32 %v1309, 1.0614054
      %v1320 = vmul.f32 %v1311, 1.0614054
      %v1321 = vmul.f32 %v1313, 1.0614054
      %v1322 = vadd.f32 %v1314, -1.4531521
      %v1323 = vadd.f32 %v1315, -1.4531521
      %v1324 = vadd.f32 %v1316, -1.4531521
      %v1325 = vadd.f32 %v1317, -1.4531521
      %v1326 = vadd.f32 %v1318, -1.4531521
      %v1327 = vadd.f32 %v1319, -1.4531521
      %v1328 = vadd.f32 %v1320, -1.4531521
      %v1329 = vadd.f32 %v1321, -1.4531521
      %v1330 = vmul.f32 %v1299, %v1322
      %v1331 = vmul.f32 %v1301, %v1323
      %v1332 = vmul.f32 %v1303, %v1324
      %v1333 = vmul.f32 %v1305, %v1325
      %v1334 = vmul.f32 %v1307, %v1326
      %v1335 = vmul.f32 %v1309, %v1327
      %v1336 = vmul.f32 %v1311, %v1328
      %v1337 = vmul.f32 %v1313, %v1329
      %v1338 = vadd.f32 %v1330, 1.4214138
      %v1339 = vadd.f32 %v1331, 1.4214138
      %v1340 = vadd.f32 %v1332, 1.4214138
      %v1341 = vadd.f32 %v1333, 1.4214138
      %v1342 = vadd.f32 %v1334, 1.4214138
      %v1343 = vadd.f32 %v1335, 1.4214138
      %v1344 = vadd.f32 %v1336, 1.4214138
      %v1345 = vadd.f32 %v1337, 1.4214138
      %v1346 = vmul.f32 %v1299, %v1338
      %v1347 = vmul.f32 %v1301, %v1339
      %v1348 = vmul.f32 %v1303, %v1340
      %v1349 = vmul.f32 %v1305, %v1341
      %v1350 = vmul.f32 %v1307, %v1342
      %v1351 = vmul.f32 %v1309, %v1343
      %v1352 = vmul.f32 %v1311, %v1344
      %v1353 = vmul.f32 %v1313, %v1345
      %v1354 = vadd.f32 %v1346, -0.28449672
      %v1355 = vadd.f32 %v1347, -0.28449672
      %v1356 = vadd.f32 %v1348, -0.28449672
      %v1357 = vadd.f32 %v1349, -0.28449672
      %v1358 = vadd.f32 %v1350, -0.28449672
      %v1359 = vadd.f32 %v1351, -0.28449672
      %v1360 = vadd.f32 %v1352, -0.28449672
      %v1361 = vadd.f32 %v1353, -0.28449672
      %v1362 = vmul.f32 %v1299, %v1354
      %v1363 = vmul.f32 %v1301, %v1355
      %v1364 = vmul.f32 %v1303, %v1356
      %v1365 = vmul.f32 %v1305, %v1357
      %v1366 = vmul.f32 %v1307, %v1358
      %v1367 = vmul.f32 %v1309, %v1359
      %v1368 = vmul.f32 %v1311, %v1360
      %v1369 = vmul.f32 %v1313, %v1361
      %v1370 = vadd.f32 %v1362, 0.2548296
      %v1371 = vadd.f32 %v1363, 0.2548296
      %v1372 = vadd.f32 %v1364, 0.2548296
      %v1373 = vadd.f32 %v1365, 0.2548296
      %v1374 = vadd.f32 %v1366, 0.2548296
      %v1375 = vadd.f32 %v1367, 0.2548296
      %v1376 = vadd.f32 %v1368, 0.2548296
      %v1377 = vadd.f32 %v1369, 0.2548296
      %v1378 = vmul.f32 %v1299, %v1370
      %v1379 = vmul.f32 %v1301, %v1371
      %v1380 = vmul.f32 %v1303, %v1372
      %v1381 = vmul.f32 %v1305, %v1373
      %v1382 = vmul.f32 %v1307, %v1374
      %v1383 = vmul.f32 %v1309, %v1375
      %v1384 = vmul.f32 %v1311, %v1376
      %v1385 = vmul.f32 %v1313, %v1377
      %v1386 = vsub.f32 0.0, %v1274
      %v1387 = vsub.f32 0.0, %v1275
      %v1388 = vsub.f32 0.0, %v1276
      %v1389 = vsub.f32 0.0, %v1277
      %v1390 = vsub.f32 0.0, %v1278
      %v1391 = vsub.f32 0.0, %v1279
      %v1392 = vsub.f32 0.0, %v1280
      %v1393 = vsub.f32 0.0, %v1281
      %v1394 = vmul.f32 %v1386, %v1274
      %v1395 = vmul.f32 %v1387, %v1275
      %v1396 = vmul.f32 %v1388, %v1276
      %v1397 = vmul.f32 %v1389, %v1277
      %v1398 = vmul.f32 %v1390, %v1278
      %v1399 = vmul.f32 %v1391, %v1279
      %v1400 = vmul.f32 %v1392, %v1280
      %v1401 = vmul.f32 %v1393, %v1281
      %v1402 = vmul.f32 %v1394, 1.442695
      %v1403 = vpow.pop %v1402
      %v1404 = vmul.f32 %v1395, 1.442695
      %v1405 = vpow.pop %v1404
      %v1406 = vmul.f32 %v1396, 1.442695
      %v1407 = vpow.pop %v1406
      %v1408 = vmul.f32 %v1397, 1.442695
      %v1409 = vpow.pop %v1408
      %v1410 = vmul.f32 %v1398, 1.442695
      %v1411 = vpow.pop %v1410
      %v1412 = vmul.f32 %v1399, 1.442695
      %v1413 = vpow.pop %v1412
      %v1414 = vmul.f32 %v1400, 1.442695
      %v1415 = vpow.pop %v1414
      %v1416 = vmul.f32 %v1401, 1.442695
      %v1417 = vpow.pop %v1416
      %v1418 = vmul.f32 %v1378, %v1403
      %v1419 = vmul.f32 %v1379, %v1405
      %v1420 = vmul.f32 %v1380, %v1407
      %v1421 = vmul.f32 %v1381, %v1409
      %v1422 = vmul.f32 %v1382, %v1411
      %v1423 = vmul.f32 %v1383, %v1413
      %v1424 = vmul.f32 %v1384, %v1415
      %v1425 = vmul.f32 %v1385, %v1417
      %v1426 = vsub.f32 1.0, %v1418
      %v1427 = vsub.f32 1.0, %v1419
      %v1428 = vsub.f32 1.0, %v1420
      %v1429 = vsub.f32 1.0, %v1421
      %v1430 = vsub.f32 1.0, %v1422
      %v1431 = vsub.f32 1.0, %v1423
      %v1432 = vsub.f32 1.0, %v1424
      %v1433 = vsub.f32 1.0, %v1425
      %v1434 = vmul.f32 %v1266, %v1426
      %v1435 = vmul.f32 %v1267, %v1427
      %v1436 = vmul.f32 %v1268, %v1428
      %v1437 = vmul.f32 %v1269, %v1429
      %v1438 = vmul.f32 %v1270, %v1430
      %v1439 = vmul.f32 %v1271, %v1431
      %v1440 = vmul.f32 %v1272, %v1432
      %v1441 = vmul.f32 %v1273, %v1433
      %v1442 = vadd.f32 %v1434, 1.0
      %v1443 = vadd.f32 %v1435, 1.0
      %v1444 = vadd.f32 %v1436, 1.0
      %v1445 = vadd.f32 %v1437, 1.0
      %v1446 = vadd.f32 %v1438, 1.0
      %v1447 = vadd.f32 %v1439, 1.0
      %v1448 = vadd.f32 %v1440, 1.0
      %v1449 = vadd.f32 %v1441, 1.0
      %v1450 = vmul.f32 %v1242, %v1442
      %v1451 = vmul.f32 %v1243, %v1443
      %v1452 = vmul.f32 %v1244, %v1444
      %v1453 = vmul.f32 %v1245, %v1445
      %v1454 = vmul.f32 %v1246, %v1446
      %v1455 = vmul.f32 %v1247, %v1447
      %v1456 = vmul.f32 %v1248, %v1448
      %v1457 = vmul.f32 %v1249, %v1449
      %v1458 = vld [vmem:[%s3] sm:$0xf]
      %v1459 = vld [vmem:[%s3 + $0x4] sm:$0x3]
      %v1460 = vpack.c.bf16 %v1452, %v1450
      %v1461 = vpack.c.bf16 %v1453, %v1451
      %v1462 = vpack.c.bf16 %v1456, %v1454
      %v1463 = vpack.c.bf16 %v1457, %v1455
      %v1464 = vld [vmem:[%s4] sm:$0xff]
      %v1465 = vld [vmem:[%s4 + $0x8] sm:$0xf]
      %1467 = vset.pattern.permute.xlu0 0
      %1468 = vperm.xlu0 %1467, %v1464
      %v1469 = vpop.permute.xlu0 %1468
      %1472 = vset.pattern.permute.xlu0 0
      %1473 = vperm.xlu0 %1472, %v1465
      %v1474 = vpop.permute.xlu0 %1473
      %v1478 = vunpack.c.l.b16 %v1458
      %v1479 = vunpack.c.l.b16 %v1459
      %v1480 = vpack.c.b16 %v1479, %v1478
      %v1482 = vsel %vm340, %v1480, 0
      %1484 = vmatprep.subr.bf16.mxu0 %v1461
      %1485 = vmatpush1.bf16.msra.mxu0 %v1460
      %1486 = vmatprep.subr.bf16.mxu0 %v1463
      %1487 = vmatpush1.bf16.msra.mxu0 %v1462
      %1488 = vmatprep.subr.bf16.mxu0 0
      %1489 = vmatpush1.bf16.msra.mxu0 0
      %1490 = vmatprep.subr.bf16.mxu0 0
      %1491 = vmatpush1.bf16.msra.mxu0 0
      %1492 = vmatprep.subr.bf16.mxu0 0
      %1493 = vmatpush1.bf16.msra.mxu0 0
      %1494 = vmatprep.subr.bf16.mxu0 0
      %1495 = vmatpush1.bf16.msra.mxu0 0
      %1496 = vmatprep.subr.bf16.mxu0 0
      %1497 = vmatpush1.bf16.msra.mxu0 0
      %1498 = vmatprep.subr.bf16.mxu0 0
      %1499 = vmatpush1.bf16.msra.mxu0 0
      %1500 = vmatprep.subr.bf16.mxu0 0
      %1501 = vmatpush1.bf16.msra.mxu0 0
      %1502 = vmatprep.subr.bf16.mxu0 0
      %1503 = vmatpush1.bf16.msra.mxu0 0
      %1504 = vmatprep.subr.bf16.mxu0 0
      %1505 = vmatpush1.bf16.msra.mxu0 0
      %1506 = vmatprep.subr.bf16.mxu0 0
      %1507 = vmatpush1.bf16.msra.mxu0 0
      %1508 = vmatprep.subr.bf16.mxu0 0
      %1509 = vmatpush1.bf16.msra.mxu0 0
      %1510 = vmatprep.subr.bf16.mxu0 0
      %1511 = vmatpush1.bf16.msra.mxu0 0
      %1512 = vmatprep.subr.bf16.mxu0 0
      %1513 = vmatpush1.bf16.msra.mxu0 0
      %1514 = vmatprep.subr.bf16.mxu0 0
      %1515 = vmatpush1.bf16.msra.mxu0 0
      %1516 = vmatprep.mubr.bf16.mxu0 0
      %1517 = vmatmul.mubr.bf16.gmra.mrb[0].mxu0 %v1482
      %v1518 = vpop.f32.mrb[0].mxu0
      %v1519 = vadd.f32 %v1469, %v1518
      %v1520 = vpop.f32.mrb[0].mxu0
      %v1521 = vadd.f32 %v1469, %v1520
      %v1522 = vpop.f32.mrb[0].mxu0
      %v1523 = vadd.f32 %v1474, %v1522
      %v1524 = vpop.f32.mrb[0].mxu0
      %v1525 = vadd.f32 %v1474, %v1524
      %1526 = vdwg.mxu0
      %v1527 = vpack.c.bf16 %v1523, %v1519
      %v1528 = vpack.c.bf16 %v1525, %v1521
      %v1531 = vunpack.c.l.b16 %v1527
      %v1532 = vunpack.c.l.b16 %v1528
      %v1533 = vunpack.c.h.b16 %v1527
      %v1534 = vunpack.c.h.b16 %v1528
      %v1535 = vpack.c.b16 %v1532, %v1531
      %v1536 = vpack.c.b16 %v1534, %v1533
      %1539 = vst [vmem:[%s260] sm:$0xff] %v1535
      %1540 = vst [vmem:[%s260 + $0x8] sm:$0x33] %v1536
      %p1541 = scmp.lt.s32.totalorder %s20, 1
      %s1542 = scalar_select %p1541, %s20, 1
      %p1543 = scmp.lt.s32.totalorder %s21, 1
      %s1544 = scalar_select %p1543, %s21, 1
      %s1545 = smul.addr %s1544, 4
      %s1546 = smul.addr %s1542, 8
      %s1547 = sadd.s32 %s1545, %s1546
      %s1548 = smul.addr %s1547, 4
      %s1549 = scalar_lea.vmem %s5, %s1548
      // Predicated region
      $region41: #{rgb_head_forward.1} parent=39 // pred_check
        %p1550 = pneg %p160
      $region42: #{rgb_head_forward.1} parent=39 // pred_check_branch
        %1552 = sbr.rel (%p1550) target = $region44
      $region43: #{rgb_head_forward.1} parent=39 // pred_region
        _
      $region44: #{rgb_head_forward.1} parent=39 // pred_fallthru
        _
    $region40: #{rgb_head_forward.1} parent=5 // pred_fallthru
      _
    %p1553 = scmp.le.s32.totalorder 2, %s11
    // Predicated region
    $region45: #{rgb_head_forward.1} parent=5 // pred_check
      %p1554 = pneg %p1553
    $region46: #{rgb_head_forward.1} parent=5 // pred_check_branch
      %1556 = sbr.rel (%p1554) target = $region48
    $region47: #{rgb_head_forward.1} parent=5 // pred_region
      %s1557 = ssub.s32 %s11, 2
      // Predicated region
      $region49: #{rgb_head_forward.1} parent=47 // pred_check
        %p1558 = pneg %p166
      $region50: #{rgb_head_forward.1} parent=47 // pred_check_branch
        %1560 = sbr.rel (%p1558) target = $region52
      $region51: #{rgb_head_forward.1} parent=47 // pred_region
        %p1561 = scmp.lt.s32.totalorder %s22, 1
        %s1562 = scalar_select %p1561, %s22, 1
        %p1563 = scmp.lt.s32.totalorder %s23, 1
        %s1564 = scalar_select %p1563, %s23, 1
        %s1565 = smul.addr %s1564, 4
        %s1566 = smul.addr %s1562, 8
        %s1567 = sadd.s32 %s1565, %s1566
        %s1568 = smul.addr %s1567, 4
        %s1569 = scalar_lea.vmem %s5, %s1568
      $region52: #{rgb_head_forward.1} parent=47 // pred_fallthru
        _
    $region48: #{rgb_head_forward.1} parent=5 // pred_fallthru
      _
  $region6: #{rgb_head_forward.1} parent=0 // loop_footer
    %s15 = sadd.s32 1, %s11
  $region7: #{rgb_head_forward.1} parent=0 // loop_footer_branch
    %10 = sbr.rel target = $region3
  $region8: #{rgb_head_forward.1} parent=0 // loop_exit
    _

</llo_original>
